<compile_context>
chip_gen: v7x
topology: tpu7x:2x2x1
jax: 0.10.0
libtpu: 0.0.40
codegen_flags: <defaults>
</compile_context>

<pallas_src>
import jax
import jax.numpy as jnp
from jax.experimental import pallas as pl
from jax.experimental.pallas import tpu as pltpu  # noqa: F401  (TPU backend)

# ---------------- model hyper-parameters (small, consistent with the module) ---
B = 2            # batch
N = 8            # tokens per example
DIM = 32         # model dim
DEPTH = 2        # number of (CrossAttention, FeedForward) layers
HEADS = 4
DIM_HEAD = 16
INNER = HEADS * DIM_HEAD          # 64
MLP_DIM = 64
SCALE = DIM_HEAD ** (-0.5)
EPS = 1e-5                        # torch LayerNorm default
T = B * N                         # 16  flattened token count
HT = HEADS * T                    # 64  head-major row count


def _layer_norm(h, g, b):
    mu = jnp.mean(h, axis=-1, keepdims=True)
    var = jnp.mean((h - mu) ** 2, axis=-1, keepdims=True)
    return (h - mu) * jax.lax.rsqrt(var + EPS) * g + b


def _gelu_erf_approx(v):
    # exact-erf GELU (torch.nn.GELU() default numerics); erf via the
    # Abramowitz-Stegun 7.1.26 rational approximation (max abs error 1.5e-7).
    z = v * 0.7071067811865476
    az = jnp.abs(z)
    t = 1.0 / (1.0 + 0.3275911 * az)
    poly = t * (0.254829592
                + t * (-0.284496736
                       + t * (1.421413741
                              + t * (-1.453152027 + t * 1.061405429))))
    erf_abs = 1.0 - poly * jnp.exp(-az * az)
    erf_z = jnp.where(z >= 0, erf_abs, -erf_abs)
    return 0.5 * v * (1.0 + erf_z)


# ------------------------------- Pallas kernel --------------------------------
def cross_transformer_kernel(x_ref, y_ref, bias_ref,
                             ln1g_ref, ln1b_ref, wattn_ref, bo_ref,
                             ln2g_ref, ln2b_ref, w1_ref, b1_ref, w2_ref, b2_ref,
                             lnfg_ref, lnfb_ref,
                             o_ref):
    x = x_ref[...]                 # [T, DIM]  flattened batch*tokens (queries)
    y = y_ref[...]                 # [T, DIM]  flattened batch*tokens (keys/values)
    bias = bias_ref[...]           # [HT, HT]  (head, example) block-diag additive mask

    def head_rows(mat, d):         # [T, HEADS*d] -> [HEADS*T, d]  (head-major rows)
        return jnp.concatenate(
            [mat[:, h * d:(h + 1) * d] for h in range(HEADS)], axis=0)

    for l in range(DEPTH):
        # ---- fused pre-LN over the stacked [x; y] slab (one LN per layer) ----
        xy_n = _layer_norm(jnp.concatenate([x, y], axis=0),
                           ln1g_ref[l], ln1b_ref[l])                 # [2T, DIM]

        # ---- one fused projection matmul: [ q | k | v@Wout (per head) ] ------
        qkvo = jnp.dot(xy_n, wattn_ref[l],
                       preferred_element_type=jnp.float32)           # [2T, 256]
        q = qkvo[:T, 0:INNER]                 # from x rows            [T, 64]
        k = qkvo[T:, INNER:2 * INNER]         # from y rows            [T, 64]
        vo = qkvo[T:, 2 * INNER:]             # from y rows, head-blk  [T, 128]

        qh = head_rows(q, DIM_HEAD)           # [HT, 16]
        kh = head_rows(k, DIM_HEAD)           # [HT, 16]
        voh = head_rows(vo, DIM)              # [HT, 32]

        # ---- attention = 2 dense MXU matmuls on 64-wide tiles ----------------
        dots = jax.lax.dot_general(           # q @ k^T (NT form, no transpose)
            qh, kh, (((1,), (1,)), ((), ())),
            preferred_element_type=jnp.float32) * SCALE + bias       # [HT, HT]
        m = jnp.max(dots, axis=-1, keepdims=True)
        e = jnp.exp(dots - m)
        denom = jnp.sum(e, axis=-1, keepdims=True)
        attn = e * pl.reciprocal(denom, approx=True)                 # [HT, HT]
        po = jnp.dot(attn, voh, preferred_element_type=jnp.float32)  # [HT, DIM]

        # ---- fold heads (3 aligned sublane adds) + residual ------------------
        proj = po[0:T]
        for h in range(1, HEADS):
            proj = proj + po[h * T:(h + 1) * T]
        x = x + proj + bo_ref[l]

        # ------------------------------ FeedForward ---------------------------
        hn = _layer_norm(x, ln2g_ref[l], ln2b_ref[l])
        h1 = jnp.dot(hn, w1_ref[l], preferred_element_type=jnp.float32) + b1_ref[l]
        h1 = _gelu_erf_approx(h1)
        h2 = jnp.dot(h1, w2_ref[l], preferred_element_type=jnp.float32) + b2_ref[l]
        x = x + h2

    # final LayerNorm — single store ([16, 32]; lane-dense repack skipped, see header)
    o_ref[...] = _layer_norm(x, lnfg_ref[...], lnfb_ref[...]).astype(o_ref.dtype)


# ------------------------------- wrapper ---------------------------------------
def cross_transformer_pallas(x, y, params):
    assert x.shape == (B, N, DIM) and y.shape == (B, N, DIM)

    # flatten batch*tokens on the XLA side (free layout plumbing)
    x2d = x.reshape(T, DIM).astype(jnp.float32)
    y2d = y.reshape(T, DIM).astype(jnp.float32)

    # Combined (head, example) block-diagonal additive mask for the [HT, HT]
    # head-major attention scores: 0 where head AND example match, -1e30 otherwise.
    idx = jnp.arange(HT, dtype=jnp.int32)
    head_id = idx // T
    ex_id = (idx % T) // N
    same = (head_id[:, None] == head_id[None, :]) & (ex_id[:, None] == ex_id[None, :])
    bias = jnp.where(same, 0.0, -1e30).astype(jnp.float32)

    # Fused projection weight per layer: [ Wq | Wk | (Wv_h @ Wout_h)_h ] -> [DIM, 256].
    wv4 = params["wv"].reshape(DEPTH, DIM, HEADS, DIM_HEAD)
    wo4 = params["wo"].reshape(DEPTH, HEADS, DIM_HEAD, DIM)
    w_vo = jnp.einsum("lchd,lhdk->lchk", wv4, wo4).reshape(DEPTH, DIM, HEADS * DIM)
    w_attn = jnp.concatenate([params["wq"], params["wk"], w_vo], axis=-1)  # [L, 32, 256]

    # Per-layer vectors kept [DEPTH, 1, D] so in-kernel loads are already 2-D.
    weights = [
        params["ln1_g"].reshape(DEPTH, 1, DIM), params["ln1_b"].reshape(DEPTH, 1, DIM),
        w_attn, params["bo"].reshape(DEPTH, 1, DIM),
        params["ln2_g"].reshape(DEPTH, 1, DIM), params["ln2_b"].reshape(DEPTH, 1, DIM),
        params["w1"], params["b1"].reshape(DEPTH, 1, MLP_DIM),
        params["w2"], params["b2"].reshape(DEPTH, 1, DIM),
        params["lnf_g"].reshape(1, DIM), params["lnf_b"].reshape(1, DIM),
    ]

    flops = DEPTH * (
        2 * (2 * T) * DIM * (2 * INNER + HEADS * DIM)    # fused q/k/(v@Wout) projection
        + 2 * HT * HT * DIM_HEAD                         # q @ k^T
        + 2 * HT * HT * DIM                              # attn @ (v@Wout)
        + 2 * T * DIM * MLP_DIM + 2 * T * MLP_DIM * DIM  # MLP
    )
    transcendentals = DEPTH * (HT * HT + T * MLP_DIM) + 10 * T
    bytes_accessed = 4 * (2 * T * DIM + HT * HT
                          + sum(int(w.size) for w in weights) + T * DIM)

    out2d = pl.pallas_call(
        cross_transformer_kernel,
        out_shape=jax.ShapeDtypeStruct((T, DIM), jnp.float32),
        cost_estimate=pl.CostEstimate(
            flops=flops,
            transcendentals=transcendentals,
            bytes_accessed=bytes_accessed),
    )(x2d, y2d, bias, *weights)

    return out2d.reshape(B, N, DIM)


# ---------------- pure-JAX reference (mirrors the PyTorch module) ---------------
def cross_transformer_reference(x, y, params):
    hp = jax.lax.Precision.HIGHEST
    x = x.astype(jnp.float32)
    y = y.astype(jnp.float32)
    for l in range(DEPTH):
        g, b = params["ln1_g"][l], params["ln1_b"][l]
        xn = _layer_norm(x, g, b)            # CrossAttention.norm applied to x
        yn = _layer_norm(y, g, b)            # ... and (same params) to y
        q = jnp.dot(xn, params["wq"][l], precision=hp)
        k = jnp.dot(yn, params["wk"][l], precision=hp)
        v = jnp.dot(yn, params["wv"][l], precision=hp)

        def split(t):
            return t.reshape(B, N, HEADS, DIM_HEAD).transpose(0, 2, 1, 3)

        qh, kh, vh = split(q), split(k), split(v)
        dots = jnp.einsum("bhnd,bhmd->bhnm", qh, kh, precision=hp) * SCALE
        attn = jax.nn.softmax(dots, axis=-1)
        o = jnp.einsum("bhnm,bhmd->bhnd", attn, vh, precision=hp)
        o = o.transpose(0, 2, 1, 3).reshape(B, N, INNER)
        x = jnp.dot(o, params["wo"][l], precision=hp) + params["bo"][l] + x

        hn = _layer_norm(x, params["ln2_g"][l], params["ln2_b"][l])
        h1 = jnp.dot(hn, params["w1"][l], precision=hp) + params["b1"][l]
        h1 = 0.5 * h1 * (1.0 + jax.lax.erf(h1 * 0.7071067811865476))   # exact GELU
        x = jnp.dot(h1, params["w2"][l], precision=hp) + params["b2"][l] + x
    return _layer_norm(x, params["lnf_g"], params["lnf_b"])


def init_params(keys):
    s = 0.05
    return {
        # LayerNorm params: gamma=1, beta=0 (PyTorch default init)
        "ln1_g": jnp.ones((DEPTH, DIM), jnp.float32),
        "ln1_b": jnp.zeros((DEPTH, DIM), jnp.float32),
        "ln2_g": jnp.ones((DEPTH, DIM), jnp.float32),
        "ln2_b": jnp.zeros((DEPTH, DIM), jnp.float32),
        "lnf_g": jnp.ones((DIM,), jnp.float32),
        "lnf_b": jnp.zeros((DIM,), jnp.float32),
        # Linear weights stored [in, out]; to_kv split into wk / wv (no biases).
        "wq": s * jax.random.normal(keys[0], (DEPTH, DIM, INNER), jnp.float32),
        "wk": s * jax.random.normal(keys[1], (DEPTH, DIM, INNER), jnp.float32),
        "wv": s * jax.random.normal(keys[2], (DEPTH, DIM, INNER), jnp.float32),
        # to_out Linear(inner, dim) weight stored [INNER, DIM] (+ bias)
        "wo": s * jax.random.normal(keys[3], (DEPTH, INNER, DIM), jnp.float32),
        "bo": s * jax.random.normal(keys[4], (DEPTH, DIM), jnp.float32),
        # FeedForward Linear layers (with biases)
        "w1": s * jax.random.normal(keys[5], (DEPTH, DIM, MLP_DIM), jnp.float32),
        "b1": s * jax.random.normal(keys[6], (DEPTH, MLP_DIM), jnp.float32),
        "w2": s * jax.random.normal(keys[7], (DEPTH, MLP_DIM, DIM), jnp.float32),
        "b2": s * jax.random.normal(keys[8], (DEPTH, DIM), jnp.float32),
    }


if __name__ == "__main__":
    key = jax.random.PRNGKey(0)
    ks = jax.random.split(key, 11)
    params = init_params(ks[:9])
    x = jax.random.normal(ks[9], (B, N, DIM), jnp.float32)
    y = jax.random.normal(ks[10], (B, N, DIM), jnp.float32)

    out = cross_transformer_pallas(x, y, params)
    out = jax.block_until_ready(out)

    ref = cross_transformer_reference(x, y, params)
    assert out.shape == (B, N, DIM)
    max_diff = float(jnp.max(jnp.abs(out - ref)))
    # tolerance covers the approximate (EUP) softmax reciprocal; structural bugs
    # would produce errors >> 1e-2.
    assert jnp.allclose(out, ref, atol=2e-3, rtol=2e-3), f"max abs diff {max_diff}"

    print("KERNEL_OK")
</pallas_src>

<mosaic_0001>
module attributes {stable_mosaic.version = 11 : i64} {
  func.func @cross_transformer_kernel(%arg0: memref<16x32xf32, #tpu.memory_space<vmem>>, %arg1: memref<16x32xf32, #tpu.memory_space<vmem>>, %arg2: memref<64x64xf32, #tpu.memory_space<vmem>>, %arg3: memref<2x1x32xf32, #tpu.memory_space<vmem>>, %arg4: memref<2x1x32xf32, #tpu.memory_space<vmem>>, %arg5: memref<2x32x256xf32, #tpu.memory_space<vmem>>, %arg6: memref<2x1x32xf32, #tpu.memory_space<vmem>>, %arg7: memref<2x1x32xf32, #tpu.memory_space<vmem>>, %arg8: memref<2x1x32xf32, #tpu.memory_space<vmem>>, %arg9: memref<2x32x64xf32, #tpu.memory_space<vmem>>, %arg10: memref<2x1x64xf32, #tpu.memory_space<vmem>>, %arg11: memref<2x64x32xf32, #tpu.memory_space<vmem>>, %arg12: memref<2x1x32xf32, #tpu.memory_space<vmem>>, %arg13: memref<1x32xf32, #tpu.memory_space<vmem>>, %arg14: memref<1x32xf32, #tpu.memory_space<vmem>>, %arg15: memref<16x32xf32, #tpu.memory_space<vmem>>) attributes {dimension_semantics = [], scalar_prefetch = 0 : i64, scratch_operands = 0 : i64, tpu.core_type = #tpu.core_type<tc>} {
    %c0 = arith.constant 0 : index
    %c0_0 = arith.constant 0 : index
    %0 = vector.load %arg0[%c0, %c0_0] : memref<16x32xf32, #tpu.memory_space<vmem>>, vector<16x32xf32>
    %c0_1 = arith.constant 0 : index
    %c0_2 = arith.constant 0 : index
    %1 = vector.load %arg1[%c0_1, %c0_2] : memref<16x32xf32, #tpu.memory_space<vmem>>, vector<16x32xf32>
    %c0_3 = arith.constant 0 : index
    %c0_4 = arith.constant 0 : index
    %2 = vector.load %arg2[%c0_3, %c0_4] : memref<64x64xf32, #tpu.memory_space<vmem>>, vector<64x64xf32>
    %3 = tpu.concatenate %0, %1 in 0 : vector<16x32xf32>, vector<16x32xf32> -> vector<32x32xf32>
    %c0_5 = arith.constant 0 : index
    %c0_6 = arith.constant 0 : index
    %c0_7 = arith.constant 0 : index
    %4 = vector.load %arg3[%c0_5, %c0_6, %c0_7] : memref<2x1x32xf32, #tpu.memory_space<vmem>>, vector<1x1x32xf32>
    %5 = vector.shape_cast %4 : vector<1x1x32xf32> to vector<1x32xf32>
    %c0_8 = arith.constant 0 : index
    %c0_9 = arith.constant 0 : index
    %c0_10 = arith.constant 0 : index
    %6 = vector.load %arg4[%c0_8, %c0_9, %c0_10] : memref<2x1x32xf32, #tpu.memory_space<vmem>>, vector<1x1x32xf32>
    %7 = vector.shape_cast %6 : vector<1x1x32xf32> to vector<1x32xf32>
    %cst = arith.constant dense<0.000000e+00> : vector<32xf32>
    %8 = vector.multi_reduction <add>, %3, %cst [1] : vector<32x32xf32> to vector<32xf32>
    %9 = vector.shape_cast %8 : vector<32xf32> to vector<32x1xf32>
    %cst_11 = arith.constant 3.200000e+01 : f32
    %10 = vector.broadcast %cst_11 : f32 to vector<32x1xf32>
    %11 = arith.divf %9, %10 : vector<32x1xf32>
    %12 = vector.broadcast %11 : vector<32x1xf32> to vector<32x32xf32>
    %13 = arith.subf %3, %12 : vector<32x32xf32>
    %14 = arith.mulf %13, %13 : vector<32x32xf32>
    %cst_12 = arith.constant dense<0.000000e+00> : vector<32xf32>
    %15 = vector.multi_reduction <add>, %14, %cst_12 [1] : vector<32x32xf32> to vector<32xf32>
    %16 = vector.shape_cast %15 : vector<32xf32> to vector<32x1xf32>
    %cst_13 = arith.constant 3.200000e+01 : f32
    %17 = vector.broadcast %cst_13 : f32 to vector<32x1xf32>
    %18 = arith.divf %16, %17 : vector<32x1xf32>
    %19 = vector.broadcast %11 : vector<32x1xf32> to vector<32x32xf32>
    %20 = arith.subf %3, %19 : vector<32x32xf32>
    %cst_14 = arith.constant 9.99999974E-6 : f32
    %21 = vector.broadcast %cst_14 : f32 to vector<32x1xf32>
    %22 = arith.addf %18, %21 : vector<32x1xf32>
    %23 = math.rsqrt %22 : vector<32x1xf32>
    %24 = vector.broadcast %23 : vector<32x1xf32> to vector<32x32xf32>
    %25 = arith.mulf %20, %24 : vector<32x32xf32>
    %26 = vector.broadcast %5 : vector<1x32xf32> to vector<32x32xf32>
    %27 = arith.mulf %25, %26 : vector<32x32xf32>
    %28 = vector.broadcast %7 : vector<1x32xf32> to vector<32x32xf32>
    %29 = arith.addf %27, %28 : vector<32x32xf32>
    %c0_15 = arith.constant 0 : index
    %c0_16 = arith.constant 0 : index
    %c0_17 = arith.constant 0 : index
    %30 = vector.load %arg5[%c0_15, %c0_16, %c0_17] : memref<2x32x256xf32, #tpu.memory_space<vmem>>, vector<1x32x256xf32>
    %31 = vector.shape_cast %30 : vector<1x32x256xf32> to vector<32x256xf32>
    %cst_18 = arith.constant dense<0.000000e+00> : vector<32x256xf32>
    %32 = tpu.matmul %29, %31, %cst_18 {dimension_numbers = #tpu.dot_dimension_numbers<[1], [0], [0], [1], [0, 0, 1, 1], [], []>} : vector<32x32xf32>, vector<32x256xf32>, vector<32x256xf32> -> vector<32x256xf32>
    %33 = vector.extract_strided_slice %32 {offsets = [0, 0], sizes = [16, 64], strides = [1, 1]} : vector<32x256xf32> to vector<16x64xf32>
    %34 = vector.extract_strided_slice %32 {offsets = [16, 64], sizes = [16, 64], strides = [1, 1]} : vector<32x256xf32> to vector<16x64xf32>
    %35 = vector.extract_strided_slice %32 {offsets = [16, 128], sizes = [16, 128], strides = [1, 1]} : vector<32x256xf32> to vector<16x128xf32>
    %36 = vector.extract_strided_slice %33 {offsets = [0, 0], sizes = [16, 16], strides = [1, 1]} : vector<16x64xf32> to vector<16x16xf32>
    %37 = vector.extract_strided_slice %33 {offsets = [0, 16], sizes = [16, 16], strides = [1, 1]} : vector<16x64xf32> to vector<16x16xf32>
    %38 = vector.extract_strided_slice %33 {offsets = [0, 32], sizes = [16, 16], strides = [1, 1]} : vector<16x64xf32> to vector<16x16xf32>
    %39 = vector.extract_strided_slice %33 {offsets = [0, 48], sizes = [16, 16], strides = [1, 1]} : vector<16x64xf32> to vector<16x16xf32>
    %40 = tpu.concatenate %36, %37, %38, %39 in 0 : vector<16x16xf32>, vector<16x16xf32>, vector<16x16xf32>, vector<16x16xf32> -> vector<64x16xf32>
    %41 = vector.extract_strided_slice %34 {offsets = [0, 0], sizes = [16, 16], strides = [1, 1]} : vector<16x64xf32> to vector<16x16xf32>
    %42 = vector.extract_strided_slice %34 {offsets = [0, 16], sizes = [16, 16], strides = [1, 1]} : vector<16x64xf32> to vector<16x16xf32>
    %43 = vector.extract_strided_slice %34 {offsets = [0, 32], sizes = [16, 16], strides = [1, 1]} : vector<16x64xf32> to vector<16x16xf32>
    %44 = vector.extract_strided_slice %34 {offsets = [0, 48], sizes = [16, 16], strides = [1, 1]} : vector<16x64xf32> to vector<16x16xf32>
    %45 = tpu.concatenate %41, %42, %43, %44 in 0 : vector<16x16xf32>, vector<16x16xf32>, vector<16x16xf32>, vector<16x16xf32> -> vector<64x16xf32>
    %46 = vector.extract_strided_slice %35 {offsets = [0, 0], sizes = [16, 32], strides = [1, 1]} : vector<16x128xf32> to vector<16x32xf32>
    %47 = vector.extract_strided_slice %35 {offsets = [0, 32], sizes = [16, 32], strides = [1, 1]} : vector<16x128xf32> to vector<16x32xf32>
    %48 = vector.extract_strided_slice %35 {offsets = [0, 64], sizes = [16, 32], strides = [1, 1]} : vector<16x128xf32> to vector<16x32xf32>
    %49 = vector.extract_strided_slice %35 {offsets = [0, 96], sizes = [16, 32], strides = [1, 1]} : vector<16x128xf32> to vector<16x32xf32>
    %50 = tpu.concatenate %46, %47, %48, %49 in 0 : vector<16x32xf32>, vector<16x32xf32>, vector<16x32xf32>, vector<16x32xf32> -> vector<64x32xf32>
    %cst_19 = arith.constant dense<0.000000e+00> : vector<64x64xf32>
    %51 = tpu.matmul %40, %45, %cst_19 {dimension_numbers = #tpu.dot_dimension_numbers<[1], [1], [0], [0], [0, 0, 1, 0], [], []>} : vector<64x16xf32>, vector<64x16xf32>, vector<64x64xf32> -> vector<64x64xf32>
    %cst_20 = arith.constant 2.500000e-01 : f32
    %52 = vector.broadcast %cst_20 : f32 to vector<64x64xf32>
    %53 = arith.mulf %51, %52 : vector<64x64xf32>
    %54 = arith.addf %53, %2 : vector<64x64xf32>
    %cst_21 = arith.constant dense<0xFF800000> : vector<64xf32>
    %55 = vector.multi_reduction <maximumf>, %54, %cst_21 [1] : vector<64x64xf32> to vector<64xf32>
    %56 = vector.shape_cast %55 : vector<64xf32> to vector<64x1xf32>
    %57 = vector.broadcast %56 : vector<64x1xf32> to vector<64x64xf32>
    %58 = arith.subf %54, %57 : vector<64x64xf32>
    %59 = math.exp %58 : vector<64x64xf32>
    %cst_22 = arith.constant dense<0.000000e+00> : vector<64xf32>
    %60 = vector.multi_reduction <add>, %59, %cst_22 [1] : vector<64x64xf32> to vector<64xf32>
    %61 = vector.shape_cast %60 : vector<64xf32> to vector<64x1xf32>
    %62 = tpu.reciprocal %61 {approx = true} : vector<64x1xf32> -> vector<64x1xf32>
    %63 = vector.broadcast %62 : vector<64x1xf32> to vector<64x64xf32>
    %64 = arith.mulf %59, %63 : vector<64x64xf32>
    %cst_23 = arith.constant dense<0.000000e+00> : vector<64x32xf32>
    %65 = tpu.matmul %64, %50, %cst_23 {dimension_numbers = #tpu.dot_dimension_numbers<[1], [0], [0], [1], [0, 0, 1, 1], [], []>} : vector<64x64xf32>, vector<64x32xf32>, vector<64x32xf32> -> vector<64x32xf32>
    %66 = vector.extract_strided_slice %65 {offsets = [0, 0], sizes = [16, 32], strides = [1, 1]} : vector<64x32xf32> to vector<16x32xf32>
    %67 = vector.extract_strided_slice %65 {offsets = [16, 0], sizes = [16, 32], strides = [1, 1]} : vector<64x32xf32> to vector<16x32xf32>
    %68 = arith.addf %66, %67 : vector<16x32xf32>
    %69 = vector.extract_strided_slice %65 {offsets = [32, 0], sizes = [16, 32], strides = [1, 1]} : vector<64x32xf32> to vector<16x32xf32>
    %70 = arith.addf %68, %69 : vector<16x32xf32>
    %71 = vector.extract_strided_slice %65 {offsets = [48, 0], sizes = [16, 32], strides = [1, 1]} : vector<64x32xf32> to vector<16x32xf32>
    %72 = arith.addf %70, %71 : vector<16x32xf32>
    %73 = arith.addf %0, %72 : vector<16x32xf32>
    %c0_24 = arith.constant 0 : index
    %c0_25 = arith.constant 0 : index
    %c0_26 = arith.constant 0 : index
    %74 = vector.load %arg6[%c0_24, %c0_25, %c0_26] : memref<2x1x32xf32, #tpu.memory_space<vmem>>, vector<1x1x32xf32>
    %75 = vector.shape_cast %74 : vector<1x1x32xf32> to vector<1x32xf32>
    %76 = vector.broadcast %75 : vector<1x32xf32> to vector<16x32xf32>
    %77 = arith.addf %73, %76 : vector<16x32xf32>
    %c0_27 = arith.constant 0 : index
    %c0_28 = arith.constant 0 : index
    %c0_29 = arith.constant 0 : index
    %78 = vector.load %arg7[%c0_27, %c0_28, %c0_29] : memref<2x1x32xf32, #tpu.memory_space<vmem>>, vector<1x1x32xf32>
    %79 = vector.shape_cast %78 : vector<1x1x32xf32> to vector<1x32xf32>
    %c0_30 = arith.constant 0 : index
    %c0_31 = arith.constant 0 : index
    %c0_32 = arith.constant 0 : index
    %80 = vector.load %arg8[%c0_30, %c0_31, %c0_32] : memref<2x1x32xf32, #tpu.memory_space<vmem>>, vector<1x1x32xf32>
    %81 = vector.shape_cast %80 : vector<1x1x32xf32> to vector<1x32xf32>
    %cst_33 = arith.constant dense<0.000000e+00> : vector<16xf32>
    %82 = vector.multi_reduction <add>, %77, %cst_33 [1] : vector<16x32xf32> to vector<16xf32>
    %83 = vector.shape_cast %82 : vector<16xf32> to vector<16x1xf32>
    %cst_34 = arith.constant 3.200000e+01 : f32
    %84 = vector.broadcast %cst_34 : f32 to vector<16x1xf32>
    %85 = arith.divf %83, %84 : vector<16x1xf32>
    %86 = vector.broadcast %85 : vector<16x1xf32> to vector<16x32xf32>
    %87 = arith.subf %77, %86 : vector<16x32xf32>
    %88 = arith.mulf %87, %87 : vector<16x32xf32>
    %cst_35 = arith.constant dense<0.000000e+00> : vector<16xf32>
    %89 = vector.multi_reduction <add>, %88, %cst_35 [1] : vector<16x32xf32> to vector<16xf32>
    %90 = vector.shape_cast %89 : vector<16xf32> to vector<16x1xf32>
    %cst_36 = arith.constant 3.200000e+01 : f32
    %91 = vector.broadcast %cst_36 : f32 to vector<16x1xf32>
    %92 = arith.divf %90, %91 : vector<16x1xf32>
    %93 = vector.broadcast %85 : vector<16x1xf32> to vector<16x32xf32>
    %94 = arith.subf %77, %93 : vector<16x32xf32>
    %cst_37 = arith.constant 9.99999974E-6 : f32
    %95 = vector.broadcast %cst_37 : f32 to vector<16x1xf32>
    %96 = arith.addf %92, %95 : vector<16x1xf32>
    %97 = math.rsqrt %96 : vector<16x1xf32>
    %98 = vector.broadcast %97 : vector<16x1xf32> to vector<16x32xf32>
    %99 = arith.mulf %94, %98 : vector<16x32xf32>
    %100 = vector.broadcast %79 : vector<1x32xf32> to vector<16x32xf32>
    %101 = arith.mulf %99, %100 : vector<16x32xf32>
    %102 = vector.broadcast %81 : vector<1x32xf32> to vector<16x32xf32>
    %103 = arith.addf %101, %102 : vector<16x32xf32>
    %c0_38 = arith.constant 0 : index
    %c0_39 = arith.constant 0 : index
    %c0_40 = arith.constant 0 : index
    %104 = vector.load %arg9[%c0_38, %c0_39, %c0_40] : memref<2x32x64xf32, #tpu.memory_space<vmem>>, vector<1x32x64xf32>
    %105 = vector.shape_cast %104 : vector<1x32x64xf32> to vector<32x64xf32>
    %cst_41 = arith.constant dense<0.000000e+00> : vector<16x64xf32>
    %106 = tpu.matmul %103, %105, %cst_41 {dimension_numbers = #tpu.dot_dimension_numbers<[1], [0], [0], [1], [0, 0, 1, 1], [], []>} : vector<16x32xf32>, vector<32x64xf32>, vector<16x64xf32> -> vector<16x64xf32>
    %c0_42 = arith.constant 0 : index
    %c0_43 = arith.constant 0 : index
    %c0_44 = arith.constant 0 : index
    %107 = vector.load %arg10[%c0_42, %c0_43, %c0_44] : memref<2x1x64xf32, #tpu.memory_space<vmem>>, vector<1x1x64xf32>
    %108 = vector.shape_cast %107 : vector<1x1x64xf32> to vector<1x64xf32>
    %109 = vector.broadcast %108 : vector<1x64xf32> to vector<16x64xf32>
    %110 = arith.addf %106, %109 : vector<16x64xf32>
    %cst_45 = arith.constant 0.707106769 : f32
    %111 = vector.broadcast %cst_45 : f32 to vector<16x64xf32>
    %112 = arith.mulf %110, %111 : vector<16x64xf32>
    %113 = math.absf %112 : vector<16x64xf32>
    %cst_46 = arith.constant 0.327591091 : f32
    %114 = vector.broadcast %cst_46 : f32 to vector<16x64xf32>
    %115 = arith.mulf %114, %113 : vector<16x64xf32>
    %cst_47 = arith.constant 1.000000e+00 : f32
    %116 = vector.broadcast %cst_47 : f32 to vector<16x64xf32>
    %117 = arith.addf %116, %115 : vector<16x64xf32>
    %cst_48 = arith.constant 1.000000e+00 : f32
    %118 = vector.broadcast %cst_48 : f32 to vector<16x64xf32>
    %119 = arith.divf %118, %117 : vector<16x64xf32>
    %cst_49 = arith.constant 1.06140542 : f32
    %120 = vector.broadcast %cst_49 : f32 to vector<16x64xf32>
    %121 = arith.mulf %119, %120 : vector<16x64xf32>
    %cst_50 = arith.constant -1.45315206 : f32
    %122 = vector.broadcast %cst_50 : f32 to vector<16x64xf32>
    %123 = arith.addf %122, %121 : vector<16x64xf32>
    %124 = arith.mulf %119, %123 : vector<16x64xf32>
    %cst_51 = arith.constant 1.42141378 : f32
    %125 = vector.broadcast %cst_51 : f32 to vector<16x64xf32>
    %126 = arith.addf %125, %124 : vector<16x64xf32>
    %127 = arith.mulf %119, %126 : vector<16x64xf32>
    %cst_52 = arith.constant -0.284496725 : f32
    %128 = vector.broadcast %cst_52 : f32 to vector<16x64xf32>
    %129 = arith.addf %128, %127 : vector<16x64xf32>
    %130 = arith.mulf %119, %129 : vector<16x64xf32>
    %cst_53 = arith.constant 0.254829586 : f32
    %131 = vector.broadcast %cst_53 : f32 to vector<16x64xf32>
    %132 = arith.addf %131, %130 : vector<16x64xf32>
    %133 = arith.mulf %119, %132 : vector<16x64xf32>
    %cst_54 = arith.constant 0.000000e+00 : f32
    %134 = vector.broadcast %cst_54 : f32 to vector<16x64xf32>
    %135 = arith.subf %134, %113 : vector<16x64xf32>
    %136 = arith.mulf %135, %113 : vector<16x64xf32>
    %137 = math.exp %136 : vector<16x64xf32>
    %138 = arith.mulf %133, %137 : vector<16x64xf32>
    %cst_55 = arith.constant 1.000000e+00 : f32
    %139 = vector.broadcast %cst_55 : f32 to vector<16x64xf32>
    %140 = arith.subf %139, %138 : vector<16x64xf32>
    %cst_56 = arith.constant 0.000000e+00 : f32
    %141 = vector.broadcast %cst_56 : f32 to vector<16x64xf32>
    %142 = arith.cmpf oge, %112, %141 : vector<16x64xf32>
    %cst_57 = arith.constant 0.000000e+00 : f32
    %143 = vector.broadcast %cst_57 : f32 to vector<16x64xf32>
    %144 = arith.subf %143, %140 : vector<16x64xf32>
    %145 = arith.select %142, %140, %144 : vector<16x64xi1>, vector<16x64xf32>
    %cst_58 = arith.constant 5.000000e-01 : f32
    %146 = vector.broadcast %cst_58 : f32 to vector<16x64xf32>
    %147 = arith.mulf %146, %110 : vector<16x64xf32>
    %cst_59 = arith.constant 1.000000e+00 : f32
    %148 = vector.broadcast %cst_59 : f32 to vector<16x64xf32>
    %149 = arith.addf %148, %145 : vector<16x64xf32>
    %150 = arith.mulf %147, %149 : vector<16x64xf32>
    %c0_60 = arith.constant 0 : index
    %c0_61 = arith.constant 0 : index
    %c0_62 = arith.constant 0 : index
    %151 = vector.load %arg11[%c0_60, %c0_61, %c0_62] : memref<2x64x32xf32, #tpu.memory_space<vmem>>, vector<1x64x32xf32>
    %152 = vector.shape_cast %151 : vector<1x64x32xf32> to vector<64x32xf32>
    %cst_63 = arith.constant dense<0.000000e+00> : vector<16x32xf32>
    %153 = tpu.matmul %150, %152, %cst_63 {dimension_numbers = #tpu.dot_dimension_numbers<[1], [0], [0], [1], [0, 0, 1, 1], [], []>} : vector<16x64xf32>, vector<64x32xf32>, vector<16x32xf32> -> vector<16x32xf32>
    %c0_64 = arith.constant 0 : index
    %c0_65 = arith.constant 0 : index
    %c0_66 = arith.constant 0 : index
    %154 = vector.load %arg12[%c0_64, %c0_65, %c0_66] : memref<2x1x32xf32, #tpu.memory_space<vmem>>, vector<1x1x32xf32>
    %155 = vector.shape_cast %154 : vector<1x1x32xf32> to vector<1x32xf32>
    %156 = vector.broadcast %155 : vector<1x32xf32> to vector<16x32xf32>
    %157 = arith.addf %153, %156 : vector<16x32xf32>
    %158 = arith.addf %77, %157 : vector<16x32xf32>
    %159 = tpu.concatenate %158, %1 in 0 : vector<16x32xf32>, vector<16x32xf32> -> vector<32x32xf32>
    %c1 = arith.constant 1 : index
    %c0_67 = arith.constant 0 : index
    %c0_68 = arith.constant 0 : index
    %160 = vector.load %arg3[%c1, %c0_67, %c0_68] : memref<2x1x32xf32, #tpu.memory_space<vmem>>, vector<1x1x32xf32>
    %161 = vector.shape_cast %160 : vector<1x1x32xf32> to vector<1x32xf32>
    %c1_69 = arith.constant 1 : index
    %c0_70 = arith.constant 0 : index
    %c0_71 = arith.constant 0 : index
    %162 = vector.load %arg4[%c1_69, %c0_70, %c0_71] : memref<2x1x32xf32, #tpu.memory_space<vmem>>, vector<1x1x32xf32>
    %163 = vector.shape_cast %162 : vector<1x1x32xf32> to vector<1x32xf32>
    %cst_72 = arith.constant dense<0.000000e+00> : vector<32xf32>
    %164 = vector.multi_reduction <add>, %159, %cst_72 [1] : vector<32x32xf32> to vector<32xf32>
    %165 = vector.shape_cast %164 : vector<32xf32> to vector<32x1xf32>
    %cst_73 = arith.constant 3.200000e+01 : f32
    %166 = vector.broadcast %cst_73 : f32 to vector<32x1xf32>
    %167 = arith.divf %165, %166 : vector<32x1xf32>
    %168 = vector.broadcast %167 : vector<32x1xf32> to vector<32x32xf32>
    %169 = arith.subf %159, %168 : vector<32x32xf32>
    %170 = arith.mulf %169, %169 : vector<32x32xf32>
    %cst_74 = arith.constant dense<0.000000e+00> : vector<32xf32>
    %171 = vector.multi_reduction <add>, %170, %cst_74 [1] : vector<32x32xf32> to vector<32xf32>
    %172 = vector.shape_cast %171 : vector<32xf32> to vector<32x1xf32>
    %cst_75 = arith.constant 3.200000e+01 : f32
    %173 = vector.broadcast %cst_75 : f32 to vector<32x1xf32>
    %174 = arith.divf %172, %173 : vector<32x1xf32>
    %175 = vector.broadcast %167 : vector<32x1xf32> to vector<32x32xf32>
    %176 = arith.subf %159, %175 : vector<32x32xf32>
    %cst_76 = arith.constant 9.99999974E-6 : f32
    %177 = vector.broadcast %cst_76 : f32 to vector<32x1xf32>
    %178 = arith.addf %174, %177 : vector<32x1xf32>
    %179 = math.rsqrt %178 : vector<32x1xf32>
    %180 = vector.broadcast %179 : vector<32x1xf32> to vector<32x32xf32>
    %181 = arith.mulf %176, %180 : vector<32x32xf32>
    %182 = vector.broadcast %161 : vector<1x32xf32> to vector<32x32xf32>
    %183 = arith.mulf %181, %182 : vector<32x32xf32>
    %184 = vector.broadcast %163 : vector<1x32xf32> to vector<32x32xf32>
    %185 = arith.addf %183, %184 : vector<32x32xf32>
    %c1_77 = arith.constant 1 : index
    %c0_78 = arith.constant 0 : index
    %c0_79 = arith.constant 0 : index
    %186 = vector.load %arg5[%c1_77, %c0_78, %c0_79] : memref<2x32x256xf32, #tpu.memory_space<vmem>>, vector<1x32x256xf32>
    %187 = vector.shape_cast %186 : vector<1x32x256xf32> to vector<32x256xf32>
    %cst_80 = arith.constant dense<0.000000e+00> : vector<32x256xf32>
    %188 = tpu.matmul %185, %187, %cst_80 {dimension_numbers = #tpu.dot_dimension_numbers<[1], [0], [0], [1], [0, 0, 1, 1], [], []>} : vector<32x32xf32>, vector<32x256xf32>, vector<32x256xf32> -> vector<32x256xf32>
    %189 = vector.extract_strided_slice %188 {offsets = [0, 0], sizes = [16, 64], strides = [1, 1]} : vector<32x256xf32> to vector<16x64xf32>
    %190 = vector.extract_strided_slice %188 {offsets = [16, 64], sizes = [16, 64], strides = [1, 1]} : vector<32x256xf32> to vector<16x64xf32>
    %191 = vector.extract_strided_slice %188 {offsets = [16, 128], sizes = [16, 128], strides = [1, 1]} : vector<32x256xf32> to vector<16x128xf32>
    %192 = vector.extract_strided_slice %189 {offsets = [0, 0], sizes = [16, 16], strides = [1, 1]} : vector<16x64xf32> to vector<16x16xf32>
    %193 = vector.extract_strided_slice %189 {offsets = [0, 16], sizes = [16, 16], strides = [1, 1]} : vector<16x64xf32> to vector<16x16xf32>
    %194 = vector.extract_strided_slice %189 {offsets = [0, 32], sizes = [16, 16], strides = [1, 1]} : vector<16x64xf32> to vector<16x16xf32>
    %195 = vector.extract_strided_slice %189 {offsets = [0, 48], sizes = [16, 16], strides = [1, 1]} : vector<16x64xf32> to vector<16x16xf32>
    %196 = tpu.concatenate %192, %193, %194, %195 in 0 : vector<16x16xf32>, vector<16x16xf32>, vector<16x16xf32>, vector<16x16xf32> -> vector<64x16xf32>
    %197 = vector.extract_strided_slice %190 {offsets = [0, 0], sizes = [16, 16], strides = [1, 1]} : vector<16x64xf32> to vector<16x16xf32>
    %198 = vector.extract_strided_slice %190 {offsets = [0, 16], sizes = [16, 16], strides = [1, 1]} : vector<16x64xf32> to vector<16x16xf32>
    %199 = vector.extract_strided_slice %190 {offsets = [0, 32], sizes = [16, 16], strides = [1, 1]} : vector<16x64xf32> to vector<16x16xf32>
    %200 = vector.extract_strided_slice %190 {offsets = [0, 48], sizes = [16, 16], strides = [1, 1]} : vector<16x64xf32> to vector<16x16xf32>
    %201 = tpu.concatenate %197, %198, %199, %200 in 0 : vector<16x16xf32>, vector<16x16xf32>, vector<16x16xf32>, vector<16x16xf32> -> vector<64x16xf32>
    %202 = vector.extract_strided_slice %191 {offsets = [0, 0], sizes = [16, 32], strides = [1, 1]} : vector<16x128xf32> to vector<16x32xf32>
    %203 = vector.extract_strided_slice %191 {offsets = [0, 32], sizes = [16, 32], strides = [1, 1]} : vector<16x128xf32> to vector<16x32xf32>
    %204 = vector.extract_strided_slice %191 {offsets = [0, 64], sizes = [16, 32], strides = [1, 1]} : vector<16x128xf32> to vector<16x32xf32>
    %205 = vector.extract_strided_slice %191 {offsets = [0, 96], sizes = [16, 32], strides = [1, 1]} : vector<16x128xf32> to vector<16x32xf32>
    %206 = tpu.concatenate %202, %203, %204, %205 in 0 : vector<16x32xf32>, vector<16x32xf32>, vector<16x32xf32>, vector<16x32xf32> -> vector<64x32xf32>
    %cst_81 = arith.constant dense<0.000000e+00> : vector<64x64xf32>
    %207 = tpu.matmul %196, %201, %cst_81 {dimension_numbers = #tpu.dot_dimension_numbers<[1], [1], [0], [0], [0, 0, 1, 0], [], []>} : vector<64x16xf32>, vector<64x16xf32>, vector<64x64xf32> -> vector<64x64xf32>
    %cst_82 = arith.constant 2.500000e-01 : f32
    %208 = vector.broadcast %cst_82 : f32 to vector<64x64xf32>
    %209 = arith.mulf %207, %208 : vector<64x64xf32>
    %210 = arith.addf %209, %2 : vector<64x64xf32>
    %cst_83 = arith.constant dense<0xFF800000> : vector<64xf32>
    %211 = vector.multi_reduction <maximumf>, %210, %cst_83 [1] : vector<64x64xf32> to vector<64xf32>
    %212 = vector.shape_cast %211 : vector<64xf32> to vector<64x1xf32>
    %213 = vector.broadcast %212 : vector<64x1xf32> to vector<64x64xf32>
    %214 = arith.subf %210, %213 : vector<64x64xf32>
    %215 = math.exp %214 : vector<64x64xf32>
    %cst_84 = arith.constant dense<0.000000e+00> : vector<64xf32>
    %216 = vector.multi_reduction <add>, %215, %cst_84 [1] : vector<64x64xf32> to vector<64xf32>
    %217 = vector.shape_cast %216 : vector<64xf32> to vector<64x1xf32>
    %218 = tpu.reciprocal %217 {approx = true} : vector<64x1xf32> -> vector<64x1xf32>
    %219 = vector.broadcast %218 : vector<64x1xf32> to vector<64x64xf32>
    %220 = arith.mulf %215, %219 : vector<64x64xf32>
    %cst_85 = arith.constant dense<0.000000e+00> : vector<64x32xf32>
    %221 = tpu.matmul %220, %206, %cst_85 {dimension_numbers = #tpu.dot_dimension_numbers<[1], [0], [0], [1], [0, 0, 1, 1], [], []>} : vector<64x64xf32>, vector<64x32xf32>, vector<64x32xf32> -> vector<64x32xf32>
    %222 = vector.extract_strided_slice %221 {offsets = [0, 0], sizes = [16, 32], strides = [1, 1]} : vector<64x32xf32> to vector<16x32xf32>
    %223 = vector.extract_strided_slice %221 {offsets = [16, 0], sizes = [16, 32], strides = [1, 1]} : vector<64x32xf32> to vector<16x32xf32>
    %224 = arith.addf %222, %223 : vector<16x32xf32>
    %225 = vector.extract_strided_slice %221 {offsets = [32, 0], sizes = [16, 32], strides = [1, 1]} : vector<64x32xf32> to vector<16x32xf32>
    %226 = arith.addf %224, %225 : vector<16x32xf32>
    %227 = vector.extract_strided_slice %221 {offsets = [48, 0], sizes = [16, 32], strides = [1, 1]} : vector<64x32xf32> to vector<16x32xf32>
    %228 = arith.addf %226, %227 : vector<16x32xf32>
    %229 = arith.addf %158, %228 : vector<16x32xf32>
    %c1_86 = arith.constant 1 : index
    %c0_87 = arith.constant 0 : index
    %c0_88 = arith.constant 0 : index
    %230 = vector.load %arg6[%c1_86, %c0_87, %c0_88] : memref<2x1x32xf32, #tpu.memory_space<vmem>>, vector<1x1x32xf32>
    %231 = vector.shape_cast %230 : vector<1x1x32xf32> to vector<1x32xf32>
    %232 = vector.broadcast %231 : vector<1x32xf32> to vector<16x32xf32>
    %233 = arith.addf %229, %232 : vector<16x32xf32>
    %c1_89 = arith.constant 1 : index
    %c0_90 = arith.constant 0 : index
    %c0_91 = arith.constant 0 : index
    %234 = vector.load %arg7[%c1_89, %c0_90, %c0_91] : memref<2x1x32xf32, #tpu.memory_space<vmem>>, vector<1x1x32xf32>
    %235 = vector.shape_cast %234 : vector<1x1x32xf32> to vector<1x32xf32>
    %c1_92 = arith.constant 1 : index
    %c0_93 = arith.constant 0 : index
    %c0_94 = arith.constant 0 : index
    %236 = vector.load %arg8[%c1_92, %c0_93, %c0_94] : memref<2x1x32xf32, #tpu.memory_space<vmem>>, vector<1x1x32xf32>
    %237 = vector.shape_cast %236 : vector<1x1x32xf32> to vector<1x32xf32>
    %cst_95 = arith.constant dense<0.000000e+00> : vector<16xf32>
    %238 = vector.multi_reduction <add>, %233, %cst_95 [1] : vector<16x32xf32> to vector<16xf32>
    %239 = vector.shape_cast %238 : vector<16xf32> to vector<16x1xf32>
    %cst_96 = arith.constant 3.200000e+01 : f32
    %240 = vector.broadcast %cst_96 : f32 to vector<16x1xf32>
    %241 = arith.divf %239, %240 : vector<16x1xf32>
    %242 = vector.broadcast %241 : vector<16x1xf32> to vector<16x32xf32>
    %243 = arith.subf %233, %242 : vector<16x32xf32>
    %244 = arith.mulf %243, %243 : vector<16x32xf32>
    %cst_97 = arith.constant dense<0.000000e+00> : vector<16xf32>
    %245 = vector.multi_reduction <add>, %244, %cst_97 [1] : vector<16x32xf32> to vector<16xf32>
    %246 = vector.shape_cast %245 : vector<16xf32> to vector<16x1xf32>
    %cst_98 = arith.constant 3.200000e+01 : f32
    %247 = vector.broadcast %cst_98 : f32 to vector<16x1xf32>
    %248 = arith.divf %246, %247 : vector<16x1xf32>
    %249 = vector.broadcast %241 : vector<16x1xf32> to vector<16x32xf32>
    %250 = arith.subf %233, %249 : vector<16x32xf32>
    %cst_99 = arith.constant 9.99999974E-6 : f32
    %251 = vector.broadcast %cst_99 : f32 to vector<16x1xf32>
    %252 = arith.addf %248, %251 : vector<16x1xf32>
    %253 = math.rsqrt %252 : vector<16x1xf32>
    %254 = vector.broadcast %253 : vector<16x1xf32> to vector<16x32xf32>
    %255 = arith.mulf %250, %254 : vector<16x32xf32>
    %256 = vector.broadcast %235 : vector<1x32xf32> to vector<16x32xf32>
    %257 = arith.mulf %255, %256 : vector<16x32xf32>
    %258 = vector.broadcast %237 : vector<1x32xf32> to vector<16x32xf32>
    %259 = arith.addf %257, %258 : vector<16x32xf32>
    %c1_100 = arith.constant 1 : index
    %c0_101 = arith.constant 0 : index
    %c0_102 = arith.constant 0 : index
    %260 = vector.load %arg9[%c1_100, %c0_101, %c0_102] : memref<2x32x64xf32, #tpu.memory_space<vmem>>, vector<1x32x64xf32>
    %261 = vector.shape_cast %260 : vector<1x32x64xf32> to vector<32x64xf32>
    %cst_103 = arith.constant dense<0.000000e+00> : vector<16x64xf32>
    %262 = tpu.matmul %259, %261, %cst_103 {dimension_numbers = #tpu.dot_dimension_numbers<[1], [0], [0], [1], [0, 0, 1, 1], [], []>} : vector<16x32xf32>, vector<32x64xf32>, vector<16x64xf32> -> vector<16x64xf32>
    %c1_104 = arith.constant 1 : index
    %c0_105 = arith.constant 0 : index
    %c0_106 = arith.constant 0 : index
    %263 = vector.load %arg10[%c1_104, %c0_105, %c0_106] : memref<2x1x64xf32, #tpu.memory_space<vmem>>, vector<1x1x64xf32>
    %264 = vector.shape_cast %263 : vector<1x1x64xf32> to vector<1x64xf32>
    %265 = vector.broadcast %264 : vector<1x64xf32> to vector<16x64xf32>
    %266 = arith.addf %262, %265 : vector<16x64xf32>
    %cst_107 = arith.constant 0.707106769 : f32
    %267 = vector.broadcast %cst_107 : f32 to vector<16x64xf32>
    %268 = arith.mulf %266, %267 : vector<16x64xf32>
    %269 = math.absf %268 : vector<16x64xf32>
    %cst_108 = arith.constant 0.327591091 : f32
    %270 = vector.broadcast %cst_108 : f32 to vector<16x64xf32>
    %271 = arith.mulf %270, %269 : vector<16x64xf32>
    %cst_109 = arith.constant 1.000000e+00 : f32
    %272 = vector.broadcast %cst_109 : f32 to vector<16x64xf32>
    %273 = arith.addf %272, %271 : vector<16x64xf32>
    %cst_110 = arith.constant 1.000000e+00 : f32
    %274 = vector.broadcast %cst_110 : f32 to vector<16x64xf32>
    %275 = arith.divf %274, %273 : vector<16x64xf32>
    %cst_111 = arith.constant 1.06140542 : f32
    %276 = vector.broadcast %cst_111 : f32 to vector<16x64xf32>
    %277 = arith.mulf %275, %276 : vector<16x64xf32>
    %cst_112 = arith.constant -1.45315206 : f32
    %278 = vector.broadcast %cst_112 : f32 to vector<16x64xf32>
    %279 = arith.addf %278, %277 : vector<16x64xf32>
    %280 = arith.mulf %275, %279 : vector<16x64xf32>
    %cst_113 = arith.constant 1.42141378 : f32
    %281 = vector.broadcast %cst_113 : f32 to vector<16x64xf32>
    %282 = arith.addf %281, %280 : vector<16x64xf32>
    %283 = arith.mulf %275, %282 : vector<16x64xf32>
    %cst_114 = arith.constant -0.284496725 : f32
    %284 = vector.broadcast %cst_114 : f32 to vector<16x64xf32>
    %285 = arith.addf %284, %283 : vector<16x64xf32>
    %286 = arith.mulf %275, %285 : vector<16x64xf32>
    %cst_115 = arith.constant 0.254829586 : f32
    %287 = vector.broadcast %cst_115 : f32 to vector<16x64xf32>
    %288 = arith.addf %287, %286 : vector<16x64xf32>
    %289 = arith.mulf %275, %288 : vector<16x64xf32>
    %cst_116 = arith.constant 0.000000e+00 : f32
    %290 = vector.broadcast %cst_116 : f32 to vector<16x64xf32>
    %291 = arith.subf %290, %269 : vector<16x64xf32>
    %292 = arith.mulf %291, %269 : vector<16x64xf32>
    %293 = math.exp %292 : vector<16x64xf32>
    %294 = arith.mulf %289, %293 : vector<16x64xf32>
    %cst_117 = arith.constant 1.000000e+00 : f32
    %295 = vector.broadcast %cst_117 : f32 to vector<16x64xf32>
    %296 = arith.subf %295, %294 : vector<16x64xf32>
    %cst_118 = arith.constant 0.000000e+00 : f32
    %297 = vector.broadcast %cst_118 : f32 to vector<16x64xf32>
    %298 = arith.cmpf oge, %268, %297 : vector<16x64xf32>
    %cst_119 = arith.constant 0.000000e+00 : f32
    %299 = vector.broadcast %cst_119 : f32 to vector<16x64xf32>
    %300 = arith.subf %299, %296 : vector<16x64xf32>
    %301 = arith.select %298, %296, %300 : vector<16x64xi1>, vector<16x64xf32>
    %cst_120 = arith.constant 5.000000e-01 : f32
    %302 = vector.broadcast %cst_120 : f32 to vector<16x64xf32>
    %303 = arith.mulf %302, %266 : vector<16x64xf32>
    %cst_121 = arith.constant 1.000000e+00 : f32
    %304 = vector.broadcast %cst_121 : f32 to vector<16x64xf32>
    %305 = arith.addf %304, %301 : vector<16x64xf32>
    %306 = arith.mulf %303, %305 : vector<16x64xf32>
    %c1_122 = arith.constant 1 : index
    %c0_123 = arith.constant 0 : index
    %c0_124 = arith.constant 0 : index
    %307 = vector.load %arg11[%c1_122, %c0_123, %c0_124] : memref<2x64x32xf32, #tpu.memory_space<vmem>>, vector<1x64x32xf32>
    %308 = vector.shape_cast %307 : vector<1x64x32xf32> to vector<64x32xf32>
    %cst_125 = arith.constant dense<0.000000e+00> : vector<16x32xf32>
    %309 = tpu.matmul %306, %308, %cst_125 {dimension_numbers = #tpu.dot_dimension_numbers<[1], [0], [0], [1], [0, 0, 1, 1], [], []>} : vector<16x64xf32>, vector<64x32xf32>, vector<16x32xf32> -> vector<16x32xf32>
    %c1_126 = arith.constant 1 : index
    %c0_127 = arith.constant 0 : index
    %c0_128 = arith.constant 0 : index
    %310 = vector.load %arg12[%c1_126, %c0_127, %c0_128] : memref<2x1x32xf32, #tpu.memory_space<vmem>>, vector<1x1x32xf32>
    %311 = vector.shape_cast %310 : vector<1x1x32xf32> to vector<1x32xf32>
    %312 = vector.broadcast %311 : vector<1x32xf32> to vector<16x32xf32>
    %313 = arith.addf %309, %312 : vector<16x32xf32>
    %314 = arith.addf %233, %313 : vector<16x32xf32>
    %c0_129 = arith.constant 0 : index
    %c0_130 = arith.constant 0 : index
    %315 = vector.load %arg13[%c0_129, %c0_130] : memref<1x32xf32, #tpu.memory_space<vmem>>, vector<1x32xf32>
    %c0_131 = arith.constant 0 : index
    %c0_132 = arith.constant 0 : index
    %316 = vector.load %arg14[%c0_131, %c0_132] : memref<1x32xf32, #tpu.memory_space<vmem>>, vector<1x32xf32>
    %cst_133 = arith.constant dense<0.000000e+00> : vector<16xf32>
    %317 = vector.multi_reduction <add>, %314, %cst_133 [1] : vector<16x32xf32> to vector<16xf32>
    %318 = vector.shape_cast %317 : vector<16xf32> to vector<16x1xf32>
    %cst_134 = arith.constant 3.200000e+01 : f32
    %319 = vector.broadcast %cst_134 : f32 to vector<16x1xf32>
    %320 = arith.divf %318, %319 : vector<16x1xf32>
    %321 = vector.broadcast %320 : vector<16x1xf32> to vector<16x32xf32>
    %322 = arith.subf %314, %321 : vector<16x32xf32>
    %323 = arith.mulf %322, %322 : vector<16x32xf32>
    %cst_135 = arith.constant dense<0.000000e+00> : vector<16xf32>
    %324 = vector.multi_reduction <add>, %323, %cst_135 [1] : vector<16x32xf32> to vector<16xf32>
    %325 = vector.shape_cast %324 : vector<16xf32> to vector<16x1xf32>
    %cst_136 = arith.constant 3.200000e+01 : f32
    %326 = vector.broadcast %cst_136 : f32 to vector<16x1xf32>
    %327 = arith.divf %325, %326 : vector<16x1xf32>
    %328 = vector.broadcast %320 : vector<16x1xf32> to vector<16x32xf32>
    %329 = arith.subf %314, %328 : vector<16x32xf32>
    %cst_137 = arith.constant 9.99999974E-6 : f32
    %330 = vector.broadcast %cst_137 : f32 to vector<16x1xf32>
    %331 = arith.addf %327, %330 : vector<16x1xf32>
    %332 = math.rsqrt %331 : vector<16x1xf32>
    %333 = vector.broadcast %332 : vector<16x1xf32> to vector<16x32xf32>
    %334 = arith.mulf %329, %333 : vector<16x32xf32>
    %335 = vector.broadcast %315 : vector<1x32xf32> to vector<16x32xf32>
    %336 = arith.mulf %334, %335 : vector<16x32xf32>
    %337 = vector.broadcast %316 : vector<1x32xf32> to vector<16x32xf32>
    %338 = arith.addf %336, %337 : vector<16x32xf32>
    %c0_138 = arith.constant 0 : index
    %c0_139 = arith.constant 0 : index
    %339 = vector.load %arg15[%c0_138, %c0_139] : memref<16x32xf32, #tpu.memory_space<vmem>>, vector<16x32xf32>
    tpu.vector_store %arg15[%c0_138, %c0_139], %338 {strides = array<i32>} : memref<16x32xf32, #tpu.memory_space<vmem>>, vector<16x32xf32>,
    return
  }
}

</mosaic_0001>

<llo_original>
// kernel: tpu_custom_call.1
$region0: #{tpu_custom_call.1}
  #allocation0 [shape = 'u32[]', space=smem, size = 0x4, offset = 0x4, fixed_abs, tag = 'smem constant byte address 0x4 - core index']
  #allocation1 [shape = 'u32[144,128]{1,0:T(1,128)}', space=vmem, size = 0x12000, scoped, tag = 'internal scratch']
  %s0 = inlined_call_operand.vmem [shape: f32[16,32], index: 0, kind: input, shape index: {}]
  %s1 = inlined_call_operand.hbm [shape: f32[16,32], index: 1, kind: input, shape index: {}]
  %s2 = inlined_call_operand.vmem [shape: f32[64,64], index: 2, kind: input, shape index: {}]
  %s3 = inlined_call_operand.vmem [shape: f32[2,1,32], index: 3, kind: input, shape index: {}]
  %s4 = inlined_call_operand.hbm [shape: f32[2,1,32], index: 4, kind: input, shape index: {}]
  %s5 = inlined_call_operand.vmem [shape: f32[2,32,256], index: 5, kind: input, shape index: {}]
  %s6 = inlined_call_operand.vmem [shape: f32[2,1,32], index: 6, kind: input, shape index: {}]
  %s7 = inlined_call_operand.vmem [shape: f32[2,1,32], index: 7, kind: input, shape index: {}]
  %s8 = inlined_call_operand.vmem [shape: f32[2,1,32], index: 8, kind: input, shape index: {}]
  %s9 = inlined_call_operand.hbm [shape: f32[2,32,64], index: 9, kind: input, shape index: {}]
  %s10 = inlined_call_operand.vmem [shape: f32[2,1,64], index: 10, kind: input, shape index: {}]
  %s11 = inlined_call_operand.vmem [shape: f32[2,64,32], index: 11, kind: input, shape index: {}]
  %s12 = inlined_call_operand.vmem [shape: f32[2,1,32], index: 12, kind: input, shape index: {}]
  %s13 = inlined_call_operand.vmem [shape: f32[1,32], index: 13, kind: input, shape index: {}]
  %s14 = inlined_call_operand.vmem [shape: f32[1,32], index: 14, kind: input, shape index: {}]
  %s15 = inlined_call_operand.hbm [shape: f32[16,32], index: 15, kind: output, shape index: {}]
  %s16 = sld [smem:[#allocation0]]
  $region82: #{tpu_custom_call.1} parent=0
    _
  %s18 = ssub.s32 1, %s16
  %s19 = scalar_select 0, %s18, %s16
  $region1: #{tpu_custom_call.1} parent=0
    #allocation2 [shape = 'u8[8192]{0}', space=vmem, size = 0x2000, scoped, tag = 'input window, operand 1, single buffered']
    #allocation3 [shape = 's32[1]{0}', space=sflag, size = 0x4, scoped, tag = 'scoped memory for tpu_custom_call.1']
    #allocation4 [shape = 's32[1]{0}', space=sflag, size = 0x4, scoped, tag = 'scoped memory for tpu_custom_call.1']
    #allocation5 [shape = 'u8[1024]{0}', space=vmem, size = 0x400, scoped, tag = 'input window, operand 4, single buffered']
    #allocation6 [shape = 's32[1]{0}', space=sflag, size = 0x4, scoped, tag = 'scoped memory for tpu_custom_call.1']
    #allocation7 [shape = 'u8[32768]{0}', space=vmem, size = 0x8000, scoped, tag = 'input window, operand 9, single buffered']
    #allocation8 [shape = 'u8[8192]{0}', space=vmem, size = 0x2000, scoped, tag = 'output window, operand 0, single buffered']
    %20 = vsyncpa [#allocation3], 0
    %21 = vsyncpa [#allocation6], 0
    %22 = vsyncpa [#allocation4], 0
    // Predicated region
    $region2: #{tpu_custom_call.1} parent=1 // pred_check
      _
    $region3: #{tpu_custom_call.1} parent=1 // pred_check_branch
      %24 = sbr.rel (0) target = $region5
    $region4: #{tpu_custom_call.1} parent=1 // pred_region
      _
    $region5: #{tpu_custom_call.1} parent=1 // pred_fallthru
      _
    // Predicated region
    $region6: #{tpu_custom_call.1} parent=1 // pred_check
      _
    $region7: #{tpu_custom_call.1} parent=1 // pred_check_branch
      %26 = sbr.rel (0) target = $region9
    $region8: #{tpu_custom_call.1} parent=1 // pred_region
      %s28 = ssub.s32 256, 256
      %29 = vsyncadd [#allocation3], %s28
      %s30 = sshll.u32 [#allocation2], 4
      %s31 = int_to_ptr.vmem [resolvable:$true] %s30
      %36 = dma.hbm_to_vmem [thread:$0]  %s1, 256, %s31, [#allocation3], 128, 128, 8
    $region9: #{tpu_custom_call.1} parent=1 // pred_fallthru
      _
    // Predicated region
    $region10: #{tpu_custom_call.1} parent=1 // pred_check
      _
    $region11: #{tpu_custom_call.1} parent=1 // pred_check_branch
      %38 = sbr.rel (0) target = $region13
    $region12: #{tpu_custom_call.1} parent=1 // pred_region
      _
    $region13: #{tpu_custom_call.1} parent=1 // pred_fallthru
      _
    // Predicated region
    $region14: #{tpu_custom_call.1} parent=1 // pred_check
      _
    $region15: #{tpu_custom_call.1} parent=1 // pred_check_branch
      %40 = sbr.rel (0) target = $region17
    $region16: #{tpu_custom_call.1} parent=1 // pred_region
      _
    $region17: #{tpu_custom_call.1} parent=1 // pred_fallthru
      _
    // Predicated region
    $region18: #{tpu_custom_call.1} parent=1 // pred_check
      _
    $region19: #{tpu_custom_call.1} parent=1 // pred_check_branch
      %42 = sbr.rel (0) target = $region21
    $region20: #{tpu_custom_call.1} parent=1 // pred_region
      %s44 = ssub.s32 32, 32
      %45 = vsyncadd [#allocation6], %s44
      %s46 = sshll.u32 [#allocation5], 4
      %s47 = int_to_ptr.vmem [resolvable:$true] %s46
      %52 = dma.hbm_to_vmem [thread:$0]  %s4, 32, %s47, [#allocation6], 16, 16, 1
    $region21: #{tpu_custom_call.1} parent=1 // pred_fallthru
      _
    // Predicated region
    $region22: #{tpu_custom_call.1} parent=1 // pred_check
      _
    $region23: #{tpu_custom_call.1} parent=1 // pred_check_branch
      %54 = sbr.rel (0) target = $region25
    $region24: #{tpu_custom_call.1} parent=1 // pred_region
      _
    $region25: #{tpu_custom_call.1} parent=1 // pred_fallthru
      _
    // Predicated region
    $region26: #{tpu_custom_call.1} parent=1 // pred_check
      _
    $region27: #{tpu_custom_call.1} parent=1 // pred_check_branch
      %56 = sbr.rel (0) target = $region29
    $region28: #{tpu_custom_call.1} parent=1 // pred_region
      _
    $region29: #{tpu_custom_call.1} parent=1 // pred_fallthru
      _
    // Predicated region
    $region30: #{tpu_custom_call.1} parent=1 // pred_check
      _
    $region31: #{tpu_custom_call.1} parent=1 // pred_check_branch
      %58 = sbr.rel (0) target = $region33
    $region32: #{tpu_custom_call.1} parent=1 // pred_region
      _
    $region33: #{tpu_custom_call.1} parent=1 // pred_fallthru
      _
    // Predicated region
    $region34: #{tpu_custom_call.1} parent=1 // pred_check
      _
    $region35: #{tpu_custom_call.1} parent=1 // pred_check_branch
      %60 = sbr.rel (0) target = $region37
    $region36: #{tpu_custom_call.1} parent=1 // pred_region
      _
    $region37: #{tpu_custom_call.1} parent=1 // pred_fallthru
      _
    // Predicated region
    $region38: #{tpu_custom_call.1} parent=1 // pred_check
      _
    $region39: #{tpu_custom_call.1} parent=1 // pred_check_branch
      %62 = sbr.rel (0) target = $region41
    $region40: #{tpu_custom_call.1} parent=1 // pred_region
      %s64 = ssub.s32 1024, 1024
      %65 = vsyncadd [#allocation6], %s64
      %s66 = sshll.u32 [#allocation7], 4
      %s67 = int_to_ptr.vmem [resolvable:$true] %s66
      %72 = dma.hbm_to_vmem [thread:$0]  %s9, 1024, %s67, [#allocation6], 128, 128, 8
    $region41: #{tpu_custom_call.1} parent=1 // pred_fallthru
      _
    // Predicated region
    $region42: #{tpu_custom_call.1} parent=1 // pred_check
      _
    $region43: #{tpu_custom_call.1} parent=1 // pred_check_branch
      %74 = sbr.rel (0) target = $region45
    $region44: #{tpu_custom_call.1} parent=1 // pred_region
      _
    $region45: #{tpu_custom_call.1} parent=1 // pred_fallthru
      _
    // Predicated region
    $region46: #{tpu_custom_call.1} parent=1 // pred_check
      _
    $region47: #{tpu_custom_call.1} parent=1 // pred_check_branch
      %76 = sbr.rel (0) target = $region49
    $region48: #{tpu_custom_call.1} parent=1 // pred_region
      _
    $region49: #{tpu_custom_call.1} parent=1 // pred_fallthru
      _
    // Predicated region
    $region50: #{tpu_custom_call.1} parent=1 // pred_check
      _
    $region51: #{tpu_custom_call.1} parent=1 // pred_check_branch
      %78 = sbr.rel (0) target = $region53
    $region52: #{tpu_custom_call.1} parent=1 // pred_region
      _
    $region53: #{tpu_custom_call.1} parent=1 // pred_fallthru
      _
    // Predicated region
    $region54: #{tpu_custom_call.1} parent=1 // pred_check
      _
    $region55: #{tpu_custom_call.1} parent=1 // pred_check_branch
      %80 = sbr.rel (0) target = $region57
    $region56: #{tpu_custom_call.1} parent=1 // pred_region
      _
    $region57: #{tpu_custom_call.1} parent=1 // pred_fallthru
      _
    // Predicated region
    $region58: #{tpu_custom_call.1} parent=1 // pred_check
      _
    $region59: #{tpu_custom_call.1} parent=1 // pred_check_branch
      %82 = sbr.rel (0) target = $region61
    $region60: #{tpu_custom_call.1} parent=1 // pred_region
      _
    $region61: #{tpu_custom_call.1} parent=1 // pred_fallthru
      _
    // Predicated region
    $region62: #{tpu_custom_call.1} parent=1 // pred_check
      _
    $region63: #{tpu_custom_call.1} parent=1 // pred_check_branch
      %84 = sbr.rel (0) target = $region65
    $region64: #{tpu_custom_call.1} parent=1 // pred_region
      %85 = dma.done [#allocation3], 256
    $region65: #{tpu_custom_call.1} parent=1 // pred_fallthru
      _
    // Predicated region
    $region66: #{tpu_custom_call.1} parent=1 // pred_check
      _
    $region67: #{tpu_custom_call.1} parent=1 // pred_check_branch
      %87 = sbr.rel (0) target = $region69
    $region68: #{tpu_custom_call.1} parent=1 // pred_region
      %88 = dma.done [#allocation6], 32
    $region69: #{tpu_custom_call.1} parent=1 // pred_fallthru
      _
    // Predicated region
    $region70: #{tpu_custom_call.1} parent=1 // pred_check
      _
    $region71: #{tpu_custom_call.1} parent=1 // pred_check_branch
      %90 = sbr.rel (0) target = $region73
    $region72: #{tpu_custom_call.1} parent=1 // pred_region
      %91 = dma.done [#allocation6], 1024
    $region73: #{tpu_custom_call.1} parent=1 // pred_fallthru
      _
    %v92 = vld [vmem:[%s0] sm:$0xff]
    %v93 = vld [vmem:[%s0 + $0x8] sm:$0xff]
    %v94 = vld [vmem:[#allocation2] sm:$0xff]
    %v95 = vld [vmem:[#allocation2 + $0x8] sm:$0xff]
    %v96 = vld [vmem:[%s2] sm:$0xff]
    %v97 = vld [vmem:[%s2 + $0x8] sm:$0xff]
    %v98 = vld [vmem:[%s2 + $0x10] sm:$0xff]
    %v99 = vld [vmem:[%s2 + $0x18] sm:$0xff]
    %v100 = vld [vmem:[%s2 + $0x20] sm:$0xff]
    %v101 = vld [vmem:[%s2 + $0x28] sm:$0xff]
    %v102 = vld [vmem:[%s2 + $0x30] sm:$0xff]
    %v103 = vld [vmem:[%s2 + $0x38] sm:$0xff]
    %v104 = vld [vmem:[%s3] sm:$0x1]
    %v105 = vld [vmem:[#allocation5] sm:$0x1]
    %vm106 = vcmask 261120
    %v107 = vsel %vm106, %v92, 0.0
    %108 = vadd.xlane.f32.xlu0 %v107
    %v109 = vpop.xlane.xlu0 %108
    %v110 = vsel %vm106, %v93, 0.0
    %111 = vadd.xlane.f32.xlu0 %v110
    %v112 = vpop.xlane.xlu0 %111
    %v113 = vsel %vm106, %v94, 0.0
    %114 = vadd.xlane.f32.xlu0 %v113
    %v115 = vpop.xlane.xlu0 %114
    %v116 = vsel %vm106, %v95, 0.0
    %117 = vadd.xlane.f32.xlu0 %v116
    %v118 = vpop.xlane.xlu0 %117
    %v119 = vrcp.pop 32.0
    %v120 = vmul.f32 %v109, %v119
    %v121 = vmul.f32 %v112, %v119
    %v122 = vmul.f32 %v115, %v119
    %v123 = vmul.f32 %v118, %v119
    %v124 = vsub.f32 %v92, %v120
    %v125 = vsub.f32 %v93, %v121
    %v126 = vsub.f32 %v94, %v122
    %v127 = vsub.f32 %v95, %v123
    %v128 = vmul.f32 %v124, %v124
    %v129 = vmul.f32 %v125, %v125
    %v130 = vmul.f32 %v126, %v126
    %v131 = vmul.f32 %v127, %v127
    %v132 = vsel %vm106, %v128, 0.0
    %133 = vadd.xlane.f32.xlu0 %v132
    %v134 = vpop.xlane.xlu0 %133
    %v135 = vsel %vm106, %v129, 0.0
    %136 = vadd.xlane.f32.xlu0 %v135
    %v137 = vpop.xlane.xlu0 %136
    %v138 = vsel %vm106, %v130, 0.0
    %139 = vadd.xlane.f32.xlu0 %v138
    %v140 = vpop.xlane.xlu0 %139
    %v141 = vsel %vm106, %v131, 0.0
    %142 = vadd.xlane.f32.xlu0 %v141
    %v143 = vpop.xlane.xlu0 %142
    %v144 = vmul.f32 %v134, %v119
    %v145 = vmul.f32 %v137, %v119
    %v146 = vmul.f32 %v140, %v119
    %v147 = vmul.f32 %v143, %v119
    %v148 = vadd.f32 %v144, 1e-05
    %v149 = vadd.f32 %v145, 1e-05
    %v150 = vadd.f32 %v146, 1e-05
    %v151 = vadd.f32 %v147, 1e-05
    %v152 = vrsqrt.pop %v148
    %v153 = vrsqrt.pop %v149
    %v154 = vrsqrt.pop %v150
    %v155 = vrsqrt.pop %v151
    %v156 = vmul.f32 %v124, %v152
    %v157 = vmul.f32 %v125, %v153
    %v158 = vmul.f32 %v126, %v154
    %v159 = vmul.f32 %v127, %v155
    %v161 = vlaneseq
    %v162 = vshrl.u32 %v161, 7
    %v163 = vsub.s32 0, %v162
    %v164 = vrot.slane %v104, %v163
    %v166 = vmul.f32 %v156, %v164
    %v167 = vmul.f32 %v157, %v164
    %v168 = vmul.f32 %v158, %v164
    %v169 = vmul.f32 %v159, %v164
    %v171 = vlaneseq
    %v172 = vshrl.u32 %v171, 7
    %v173 = vsub.s32 0, %v172
    %v174 = vrot.slane %v105, %v173
    %v176 = vadd.f32 %v166, %v174
    %v177 = vadd.f32 %v167, %v174
    %v178 = vadd.f32 %v168, %v174
    %v179 = vadd.f32 %v169, %v174
    %v180 = vld [vmem:[%s5] sm:$0xff]
    %v181 = vld [vmem:[%s5 + $0x8] sm:$0xff]
    %v182 = vld [vmem:[%s5 + $0x10] sm:$0xff]
    %v183 = vld [vmem:[%s5 + $0x18] sm:$0xff]
    %v184 = vld [vmem:[%s5 + $0x20] sm:$0xff]
    %v185 = vld [vmem:[%s5 + $0x28] sm:$0xff]
    %v186 = vld [vmem:[%s5 + $0x30] sm:$0xff]
    %v187 = vld [vmem:[%s5 + $0x38] sm:$0xff]
    %v189 = vsel %vm106, %v176, 0
    %v192 = vsel %vm106, %v177, 0
    %v195 = vsel %vm106, %v178, 0
    %v198 = vsel %vm106, %v179, 0
    %200 = vmatprep.subr.mxu0 %v181
    %201 = vmatpush1.msra.mxu0 %v180
    %202 = vmatprep.subr.mxu0 %v183
    %203 = vmatpush1.msra.mxu0 %v182
    %204 = vmatprep.subr.mxu0 %v185
    %205 = vmatpush1.msra.mxu0 %v184
    %206 = vmatprep.subr.mxu0 %v187
    %207 = vmatpush1.msra.mxu0 %v186
    %208 = vmatprep.subr.mxu0 0.0
    %209 = vmatpush1.msra.mxu0 0.0
    %210 = vmatprep.subr.mxu0 0.0
    %211 = vmatpush1.msra.mxu0 0.0
    %212 = vmatprep.subr.mxu0 0.0
    %213 = vmatpush1.msra.mxu0 0.0
    %214 = vmatprep.subr.mxu0 0.0
    %215 = vmatpush1.msra.mxu0 0.0
    %216 = vmatprep.subr.mxu0 0.0
    %217 = vmatpush1.msra.mxu0 0.0
    %218 = vmatprep.subr.mxu0 0.0
    %219 = vmatpush1.msra.mxu0 0.0
    %220 = vmatprep.subr.mxu0 0.0
    %221 = vmatpush1.msra.mxu0 0.0
    %222 = vmatprep.subr.mxu0 0.0
    %223 = vmatpush1.msra.mxu0 0.0
    %224 = vmatprep.subr.mxu0 0.0
    %225 = vmatpush1.msra.mxu0 0.0
    %226 = vmatprep.subr.mxu0 0.0
    %227 = vmatpush1.msra.mxu0 0.0
    %228 = vmatprep.subr.mxu0 0.0
    %229 = vmatpush1.msra.mxu0 0.0
    %230 = vmatprep.subr.mxu0 0.0
    %231 = vmatpush1.msra.mxu0 0.0
    %232 = vmatprep.subr.mxu0 0.0
    %233 = vmatpush1.msra.mxu0 0.0
    %234 = vmatprep.subr.mxu0 0.0
    %235 = vmatpush1.msra.mxu0 0.0
    %236 = vmatprep.subr.mxu0 0.0
    %237 = vmatpush1.msra.mxu0 0.0
    %238 = vmatprep.subr.mxu0 0.0
    %239 = vmatpush1.msra.mxu0 0.0
    %240 = vmatprep.subr.mxu0 0.0
    %241 = vmatpush1.msra.mxu0 0.0
    %242 = vmatprep.subr.mxu0 0.0
    %243 = vmatpush1.msra.mxu0 0.0
    %244 = vmatprep.subr.mxu0 0.0
    %245 = vmatpush1.msra.mxu0 0.0
    %246 = vmatprep.subr.mxu0 0.0
    %247 = vmatpush1.msra.mxu0 0.0
    %248 = vmatprep.subr.mxu0 0.0
    %249 = vmatpush1.msra.mxu0 0.0
    %250 = vmatprep.subr.mxu0 0.0
    %251 = vmatpush1.msra.mxu0 0.0
    %252 = vmatprep.subr.mxu0 0.0
    %253 = vmatpush1.msra.mxu0 0.0
    %254 = vmatprep.subr.mxu0 0.0
    %255 = vmatpush1.msra.mxu0 0.0
    %256 = vmatprep.subr.mxu0 0.0
    %257 = vmatpush1.msra.mxu0 0.0
    %258 = vmatprep.subr.mxu0 0.0
    %259 = vmatpush1.msra.mxu0 0.0
    %260 = vmatprep.subr.mxu0 0.0
    %261 = vmatpush1.msra.mxu0 0.0
    %262 = vmatprep.subr.mxu0 0.0
    %263 = vmatpush1.msra.mxu0 0.0
    %264 = vmatprep.mubr.f32.mxu0 0.0
    %265 = vmatmul.mubr.f32.gmra.mrb[0].mxu0 %v189
    %v266 = vpop.f32.mrb[0].mxu0
    %v267 = vadd.f32 0.0, %v266
    %v268 = vpop.f32.mrb[0].mxu0
    %269 = vmatprep.mubr.f32.mxu0 0.0
    %270 = vmatmul.mubr.f32.gmra.mrb[0].mxu0 %v192
    %v271 = vpop.f32.mrb[0].mxu0
    %v272 = vadd.f32 0.0, %v271
    %v273 = vpop.f32.mrb[0].mxu0
    %274 = vmatprep.mubr.f32.mxu0 0.0
    %275 = vmatmul.mubr.f32.gmra.mrb[0].mxu0 %v195
    %v276 = vpop.f32.mrb[0].mxu0
    %v277 = vadd.f32 0.0, %v276
    %v278 = vpop.f32.mrb[0].mxu0
    %v279 = vadd.f32 0.0, %v278
    %280 = vmatprep.mubr.f32.mxu0 0.0
    %281 = vmatmul.mubr.f32.gmra.mrb[0].mxu0 %v198
    %v282 = vpop.f32.mrb[0].mxu0
    %v283 = vadd.f32 0.0, %v282
    %v284 = vpop.f32.mrb[0].mxu0
    %v285 = vadd.f32 0.0, %v284
    %286 = vdwg.mxu0
    %289 = vrot.lane.b32.xlu0 %v267, 112
    %v290 = vpop.permute.xlu0 %289
    %291 = vrot.lane.b32.xlu0 %v272, 112
    %v292 = vpop.permute.xlu0 %291
    %293 = vrot.lane.b32.xlu0 %v267, 96
    %v294 = vpop.permute.xlu0 %293
    %295 = vrot.lane.b32.xlu0 %v272, 96
    %v296 = vpop.permute.xlu0 %295
    %297 = vrot.lane.b32.xlu0 %v267, 80
    %v298 = vpop.permute.xlu0 %297
    %299 = vrot.lane.b32.xlu0 %v272, 80
    %v300 = vpop.permute.xlu0 %299
    %303 = vrot.lane.b32.xlu0 %v277, 112
    %v304 = vpop.permute.xlu0 %303
    %305 = vrot.lane.b32.xlu0 %v283, 112
    %v306 = vpop.permute.xlu0 %305
    %307 = vrot.lane.b32.xlu0 %v277, 96
    %v308 = vpop.permute.xlu0 %307
    %309 = vrot.lane.b32.xlu0 %v283, 96
    %v310 = vpop.permute.xlu0 %309
    %311 = vrot.lane.b32.xlu0 %v277, 80
    %v312 = vpop.permute.xlu0 %311
    %313 = vrot.lane.b32.xlu0 %v283, 80
    %v314 = vpop.permute.xlu0 %313
    %317 = vrot.lane.b32.xlu0 %v279, 96
    %v318 = vpop.permute.xlu0 %317
    %319 = vrot.lane.b32.xlu0 %v285, 96
    %v320 = vpop.permute.xlu0 %319
    %323 = vrot.lane.b32.xlu0 %v279, 64
    %v324 = vpop.permute.xlu0 %323
    %325 = vrot.lane.b32.xlu0 %v285, 64
    %v326 = vpop.permute.xlu0 %325
    %329 = vrot.lane.b32.xlu0 %v279, 32
    %v330 = vpop.permute.xlu0 %329
    %331 = vrot.lane.b32.xlu0 %v285, 32
    %v332 = vpop.permute.xlu0 %331
    %335 = vrot.lane.b32.xlu0 %v277, 64
    %v336 = vpop.permute.xlu0 %335
    %337 = vrot.lane.b32.xlu0 %v283, 64
    %v338 = vpop.permute.xlu0 %337
    %339 = vrot.lane.b32.xlu0 %v304, 64
    %v340 = vpop.permute.xlu0 %339
    %341 = vrot.lane.b32.xlu0 %v306, 64
    %v342 = vpop.permute.xlu0 %341
    %343 = vrot.lane.b32.xlu0 %v308, 64
    %v344 = vpop.permute.xlu0 %343
    %345 = vrot.lane.b32.xlu0 %v310, 64
    %v346 = vpop.permute.xlu0 %345
    %347 = vrot.lane.b32.xlu0 %v312, 64
    %v348 = vpop.permute.xlu0 %347
    %349 = vrot.lane.b32.xlu0 %v314, 64
    %v350 = vpop.permute.xlu0 %349
    %vm351 = vcmask 130048
    %v352 = vsel %vm351, %v267, 0
    %v354 = vsel %vm351, %v272, 0
    %v356 = vsel %vm351, %v290, 0
    %v358 = vsel %vm351, %v292, 0
    %v360 = vsel %vm351, %v294, 0
    %v362 = vsel %vm351, %v296, 0
    %v364 = vsel %vm351, %v298, 0
    %v366 = vsel %vm351, %v300, 0
    %v368 = vsel %vm351, %v336, 0
    %v370 = vsel %vm351, %v338, 0
    %v372 = vsel %vm351, %v340, 0
    %v374 = vsel %vm351, %v342, 0
    %v376 = vsel %vm351, %v344, 0
    %v378 = vsel %vm351, %v346, 0
    %v380 = vsel %vm351, %v348, 0
    %v382 = vsel %vm351, %v350, 0
    %384 = vmatprep.subr.mxu0 0.0
    %385 = vmatpush1.xpose.msra.mxu0 %v368
    %386 = vmatprep.subr.mxu0 0.0
    %387 = vmatpush1.xpose.msra.mxu0 %v370
    %388 = vmatprep.subr.mxu0 0.0
    %389 = vmatpush1.xpose.msra.mxu0 %v372
    %390 = vmatprep.subr.mxu0 0.0
    %391 = vmatpush1.xpose.msra.mxu0 %v374
    %392 = vmatprep.subr.mxu0 0.0
    %393 = vmatpush1.xpose.msra.mxu0 %v376
    %394 = vmatprep.subr.mxu0 0.0
    %395 = vmatpush1.xpose.msra.mxu0 %v378
    %396 = vmatprep.subr.mxu0 0.0
    %397 = vmatpush1.xpose.msra.mxu0 %v380
    %398 = vmatprep.subr.mxu0 0.0
    %399 = vmatpush1.xpose.msra.mxu0 %v382
    %400 = vmatprep.subr.mxu0 0.0
    %401 = vmatpush1.xpose.msra.mxu0 0.0
    %402 = vmatprep.subr.mxu0 0.0
    %403 = vmatpush1.xpose.msra.mxu0 0.0
    %404 = vmatprep.subr.mxu0 0.0
    %405 = vmatpush1.xpose.msra.mxu0 0.0
    %406 = vmatprep.subr.mxu0 0.0
    %407 = vmatpush1.xpose.msra.mxu0 0.0
    %408 = vmatprep.subr.mxu0 0.0
    %409 = vmatpush1.xpose.msra.mxu0 0.0
    %410 = vmatprep.subr.mxu0 0.0
    %411 = vmatpush1.xpose.msra.mxu0 0.0
    %412 = vmatprep.subr.mxu0 0.0
    %413 = vmatpush1.xpose.msra.mxu0 0.0
    %414 = vmatprep.subr.mxu0 0.0
    %415 = vmatpush1.xpose.msra.mxu0 0.0
    %416 = vmatprep.subr.mxu0 0.0
    %417 = vmatpush1.xpose.msra.mxu0 0.0
    %418 = vmatprep.subr.mxu0 0.0
    %419 = vmatpush1.xpose.msra.mxu0 0.0
    %420 = vmatprep.subr.mxu0 0.0
    %421 = vmatpush1.xpose.msra.mxu0 0.0
    %422 = vmatprep.subr.mxu0 0.0
    %423 = vmatpush1.xpose.msra.mxu0 0.0
    %424 = vmatprep.subr.mxu0 0.0
    %425 = vmatpush1.xpose.msra.mxu0 0.0
    %426 = vmatprep.subr.mxu0 0.0
    %427 = vmatpush1.xpose.msra.mxu0 0.0
    %428 = vmatprep.subr.mxu0 0.0
    %429 = vmatpush1.xpose.msra.mxu0 0.0
    %430 = vmatprep.subr.mxu0 0.0
    %431 = vmatpush1.xpose.msra.mxu0 0.0
    %432 = vmatprep.subr.mxu0 0.0
    %433 = vmatpush1.xpose.msra.mxu0 0.0
    %434 = vmatprep.subr.mxu0 0.0
    %435 = vmatpush1.xpose.msra.mxu0 0.0
    %436 = vmatprep.subr.mxu0 0.0
    %437 = vmatpush1.xpose.msra.mxu0 0.0
    %438 = vmatprep.subr.mxu0 0.0
    %439 = vmatpush1.xpose.msra.mxu0 0.0
    %440 = vmatprep.subr.mxu0 0.0
    %441 = vmatpush1.xpose.msra.mxu0 0.0
    %442 = vmatprep.subr.mxu0 0.0
    %443 = vmatpush1.xpose.msra.mxu0 0.0
    %444 = vmatprep.subr.mxu0 0.0
    %445 = vmatpush1.xpose.msra.mxu0 0.0
    %446 = vmatprep.subr.mxu0 0.0
    %447 = vmatpush1.xpose.msra.mxu0 0.0
    %448 = vmatprep.mubr.f32.mxu0 0.0
    %449 = vmatmul.mubr.f32.gmra.mrb[0].mxu0 %v352
    %v450 = vpop.f32.mrb[0].mxu0
    %v451 = vadd.f32 0.0, %v450
    %v452 = vpop.f32.mrb[0].mxu0
    %453 = vmatprep.mubr.f32.mxu0 0.0
    %454 = vmatmul.mubr.f32.gmra.mrb[0].mxu0 %v354
    %v455 = vpop.f32.mrb[0].mxu0
    %v456 = vadd.f32 0.0, %v455
    %v457 = vpop.f32.mrb[0].mxu0
    %458 = vmatprep.mubr.f32.mxu0 0.0
    %459 = vmatmul.mubr.f32.gmra.mrb[0].mxu0 %v356
    %v460 = vpop.f32.mrb[0].mxu0
    %v461 = vadd.f32 0.0, %v460
    %v462 = vpop.f32.mrb[0].mxu0
    %463 = vmatprep.mubr.f32.mxu0 0.0
    %464 = vmatmul.mubr.f32.gmra.mrb[0].mxu0 %v358
    %v465 = vpop.f32.mrb[0].mxu0
    %v466 = vadd.f32 0.0, %v465
    %v467 = vpop.f32.mrb[0].mxu0
    %468 = vmatprep.mubr.f32.mxu0 0.0
    %469 = vmatmul.mubr.f32.gmra.mrb[0].mxu0 %v360
    %v470 = vpop.f32.mrb[0].mxu0
    %v471 = vadd.f32 0.0, %v470
    %v472 = vpop.f32.mrb[0].mxu0
    %473 = vmatprep.mubr.f32.mxu0 0.0
    %474 = vmatmul.mubr.f32.gmra.mrb[0].mxu0 %v362
    %v475 = vpop.f32.mrb[0].mxu0
    %v476 = vadd.f32 0.0, %v475
    %v477 = vpop.f32.mrb[0].mxu0
    %478 = vmatprep.mubr.f32.mxu0 0.0
    %479 = vmatmul.mubr.f32.gmra.mrb[0].mxu0 %v364
    %v480 = vpop.f32.mrb[0].mxu0
    %v481 = vadd.f32 0.0, %v480
    %v482 = vpop.f32.mrb[0].mxu0
    %483 = vmatprep.mubr.f32.mxu0 0.0
    %484 = vmatmul.mubr.f32.gmra.mrb[0].mxu0 %v366
    %v485 = vpop.f32.mrb[0].mxu0
    %v486 = vadd.f32 0.0, %v485
    %v487 = vpop.f32.mrb[0].mxu0
    %488 = vdwg.mxu0
    %v489 = vmul.f32 %v451, 0.25
    %v490 = vmul.f32 %v456, 0.25
    %v491 = vmul.f32 %v461, 0.25
    %v492 = vmul.f32 %v466, 0.25
    %v493 = vmul.f32 %v471, 0.25
    %v494 = vmul.f32 %v476, 0.25
    %v495 = vmul.f32 %v481, 0.25
    %v496 = vmul.f32 %v486, 0.25
    %v497 = vadd.f32 %v489, %v96
    %v498 = vadd.f32 %v490, %v97
    %v499 = vadd.f32 %v491, %v98
    %v500 = vadd.f32 %v492, %v99
    %v501 = vadd.f32 %v493, %v100
    %v502 = vadd.f32 %v494, %v101
    %v503 = vadd.f32 %v495, %v102
    %v504 = vadd.f32 %v496, %v103
    %vm505 = vcmask 523264
    %v506 = vsel %vm505, %v497, -inf
    %507 = vmax.xlane.f32.xlu0 %v506
    %v508 = vpop.xlane.xlu0 %507
    %v509 = vsel %vm505, %v498, -inf
    %510 = vmax.xlane.f32.xlu0 %v509
    %v511 = vpop.xlane.xlu0 %510
    %v512 = vsel %vm505, %v499, -inf
    %513 = vmax.xlane.f32.xlu0 %v512
    %v514 = vpop.xlane.xlu0 %513
    %v515 = vsel %vm505, %v500, -inf
    %516 = vmax.xlane.f32.xlu0 %v515
    %v517 = vpop.xlane.xlu0 %516
    %v518 = vsel %vm505, %v501, -inf
    %519 = vmax.xlane.f32.xlu0 %v518
    %v520 = vpop.xlane.xlu0 %519
    %v521 = vsel %vm505, %v502, -inf
    %522 = vmax.xlane.f32.xlu0 %v521
    %v523 = vpop.xlane.xlu0 %522
    %v524 = vsel %vm505, %v503, -inf
    %525 = vmax.xlane.f32.xlu0 %v524
    %v526 = vpop.xlane.xlu0 %525
    %v527 = vsel %vm505, %v504, -inf
    %528 = vmax.xlane.f32.xlu0 %v527
    %v529 = vpop.xlane.xlu0 %528
    %v530 = vsub.f32 %v497, %v508
    %v531 = vsub.f32 %v498, %v511
    %v532 = vsub.f32 %v499, %v514
    %v533 = vsub.f32 %v500, %v517
    %v534 = vsub.f32 %v501, %v520
    %v535 = vsub.f32 %v502, %v523
    %v536 = vsub.f32 %v503, %v526
    %v537 = vsub.f32 %v504, %v529
    %v538 = vmul.f32 %v530, 1.442695
    %v539 = vpow.pop %v538
    %v540 = vmul.f32 %v531, 1.442695
    %v541 = vpow.pop %v540
    %v542 = vmul.f32 %v532, 1.442695
    %v543 = vpow.pop %v542
    %v544 = vmul.f32 %v533, 1.442695
    %v545 = vpow.pop %v544
    %v546 = vmul.f32 %v534, 1.442695
    %v547 = vpow.pop %v546
    %v548 = vmul.f32 %v535, 1.442695
    %v549 = vpow.pop %v548
    %v550 = vmul.f32 %v536, 1.442695
    %v551 = vpow.pop %v550
    %v552 = vmul.f32 %v537, 1.442695
    %v553 = vpow.pop %v552
    %v554 = vsel %vm505, %v539, 0.0
    %555 = vadd.xlane.f32.xlu0 %v554
    %v556 = vpop.xlane.xlu0 %555
    %v557 = vsel %vm505, %v541, 0.0
    %558 = vadd.xlane.f32.xlu0 %v557
    %v559 = vpop.xlane.xlu0 %558
    %v560 = vsel %vm505, %v543, 0.0
    %561 = vadd.xlane.f32.xlu0 %v560
    %v562 = vpop.xlane.xlu0 %561
    %v563 = vsel %vm505, %v545, 0.0
    %564 = vadd.xlane.f32.xlu0 %v563
    %v565 = vpop.xlane.xlu0 %564
    %v566 = vsel %vm505, %v547, 0.0
    %567 = vadd.xlane.f32.xlu0 %v566
    %v568 = vpop.xlane.xlu0 %567
    %v569 = vsel %vm505, %v549, 0.0
    %570 = vadd.xlane.f32.xlu0 %v569
    %v571 = vpop.xlane.xlu0 %570
    %v572 = vsel %vm505, %v551, 0.0
    %573 = vadd.xlane.f32.xlu0 %v572
    %v574 = vpop.xlane.xlu0 %573
    %v575 = vsel %vm505, %v553, 0.0
    %576 = vadd.xlane.f32.xlu0 %v575
    %v577 = vpop.xlane.xlu0 %576
    %v578 = vrcp.pop %v556
    %v579 = vrcp.pop %v559
    %v580 = vrcp.pop %v562
    %v581 = vrcp.pop %v565
    %v582 = vrcp.pop %v568
    %v583 = vrcp.pop %v571
    %v584 = vrcp.pop %v574
    %v585 = vrcp.pop %v577
    %v586 = vmul.f32 %v539, %v578
    %v587 = vmul.f32 %v541, %v579
    %v588 = vmul.f32 %v543, %v580
    %v589 = vmul.f32 %v545, %v581
    %v590 = vmul.f32 %v547, %v582
    %v591 = vmul.f32 %v549, %v583
    %v592 = vmul.f32 %v551, %v584
    %v593 = vmul.f32 %v553, %v585
    %v595 = vsel %vm505, %v586, 0
    %v598 = vsel %vm505, %v587, 0
    %v601 = vsel %vm505, %v588, 0
    %v604 = vsel %vm505, %v589, 0
    %v607 = vsel %vm505, %v590, 0
    %v610 = vsel %vm505, %v591, 0
    %v613 = vsel %vm505, %v592, 0
    %v616 = vsel %vm505, %v593, 0
    %618 = vmatprep.subr.mxu0 0.0
    %619 = vmatpush1.msra.mxu0 %v279
    %620 = vmatprep.subr.mxu0 0.0
    %621 = vmatpush1.msra.mxu0 %v285
    %622 = vmatprep.subr.mxu0 0.0
    %623 = vmatpush1.msra.mxu0 %v318
    %624 = vmatprep.subr.mxu0 0.0
    %625 = vmatpush1.msra.mxu0 %v320
    %626 = vmatprep.subr.mxu0 0.0
    %627 = vmatpush1.msra.mxu0 %v324
    %628 = vmatprep.subr.mxu0 0.0
    %629 = vmatpush1.msra.mxu0 %v326
    %630 = vmatprep.subr.mxu0 0.0
    %631 = vmatpush1.msra.mxu0 %v330
    %632 = vmatprep.subr.mxu0 0.0
    %633 = vmatpush1.msra.mxu0 %v332
    %634 = vmatprep.subr.mxu0 0.0
    %635 = vmatpush1.msra.mxu0 0.0
    %636 = vmatprep.subr.mxu0 0.0
    %637 = vmatpush1.msra.mxu0 0.0
    %638 = vmatprep.subr.mxu0 0.0
    %639 = vmatpush1.msra.mxu0 0.0
    %640 = vmatprep.subr.mxu0 0.0
    %641 = vmatpush1.msra.mxu0 0.0
    %642 = vmatprep.subr.mxu0 0.0
    %643 = vmatpush1.msra.mxu0 0.0
    %644 = vmatprep.subr.mxu0 0.0
    %645 = vmatpush1.msra.mxu0 0.0
    %646 = vmatprep.subr.mxu0 0.0
    %647 = vmatpush1.msra.mxu0 0.0
    %648 = vmatprep.subr.mxu0 0.0
    %649 = vmatpush1.msra.mxu0 0.0
    %650 = vmatprep.subr.mxu0 0.0
    %651 = vmatpush1.msra.mxu0 0.0
    %652 = vmatprep.subr.mxu0 0.0
    %653 = vmatpush1.msra.mxu0 0.0
    %654 = vmatprep.subr.mxu0 0.0
    %655 = vmatpush1.msra.mxu0 0.0
    %656 = vmatprep.subr.mxu0 0.0
    %657 = vmatpush1.msra.mxu0 0.0
    %658 = vmatprep.subr.mxu0 0.0
    %659 = vmatpush1.msra.mxu0 0.0
    %660 = vmatprep.subr.mxu0 0.0
    %661 = vmatpush1.msra.mxu0 0.0
    %662 = vmatprep.subr.mxu0 0.0
    %663 = vmatpush1.msra.mxu0 0.0
    %664 = vmatprep.subr.mxu0 0.0
    %665 = vmatpush1.msra.mxu0 0.0
    %666 = vmatprep.subr.mxu0 0.0
    %667 = vmatpush1.msra.mxu0 0.0
    %668 = vmatprep.subr.mxu0 0.0
    %669 = vmatpush1.msra.mxu0 0.0
    %670 = vmatprep.subr.mxu0 0.0
    %671 = vmatpush1.msra.mxu0 0.0
    %672 = vmatprep.subr.mxu0 0.0
    %673 = vmatpush1.msra.mxu0 0.0
    %674 = vmatprep.subr.mxu0 0.0
    %675 = vmatpush1.msra.mxu0 0.0
    %676 = vmatprep.subr.mxu0 0.0
    %677 = vmatpush1.msra.mxu0 0.0
    %678 = vmatprep.subr.mxu0 0.0
    %679 = vmatpush1.msra.mxu0 0.0
    %680 = vmatprep.subr.mxu0 0.0
    %681 = vmatpush1.msra.mxu0 0.0
    %682 = vmatprep.mubr.f32.mxu0 0.0
    %683 = vmatmul.mubr.f32.gmra.mrb[0].mxu0 %v595
    %v684 = vpop.f32.mrb[0].mxu0
    %v685 = vadd.f32 0.0, %v684
    %v686 = vpop.f32.mrb[0].mxu0
    %687 = vmatprep.mubr.f32.mxu0 0.0
    %688 = vmatmul.mubr.f32.gmra.mrb[0].mxu0 %v598
    %v689 = vpop.f32.mrb[0].mxu0
    %v690 = vadd.f32 0.0, %v689
    %v691 = vpop.f32.mrb[0].mxu0
    %692 = vmatprep.mubr.f32.mxu0 0.0
    %693 = vmatmul.mubr.f32.gmra.mrb[0].mxu0 %v601
    %v694 = vpop.f32.mrb[0].mxu0
    %v695 = vadd.f32 0.0, %v694
    %v696 = vpop.f32.mrb[0].mxu0
    %697 = vmatprep.mubr.f32.mxu0 0.0
    %698 = vmatmul.mubr.f32.gmra.mrb[0].mxu0 %v604
    %v699 = vpop.f32.mrb[0].mxu0
    %v700 = vadd.f32 0.0, %v699
    %v701 = vpop.f32.mrb[0].mxu0
    %702 = vmatprep.mubr.f32.mxu0 0.0
    %703 = vmatmul.mubr.f32.gmra.mrb[0].mxu0 %v607
    %v704 = vpop.f32.mrb[0].mxu0
    %v705 = vadd.f32 0.0, %v704
    %v706 = vpop.f32.mrb[0].mxu0
    %707 = vmatprep.mubr.f32.mxu0 0.0
    %708 = vmatmul.mubr.f32.gmra.mrb[0].mxu0 %v610
    %v709 = vpop.f32.mrb[0].mxu0
    %v710 = vadd.f32 0.0, %v709
    %v711 = vpop.f32.mrb[0].mxu0
    %712 = vmatprep.mubr.f32.mxu0 0.0
    %713 = vmatmul.mubr.f32.gmra.mrb[0].mxu0 %v613
    %v714 = vpop.f32.mrb[0].mxu0
    %v715 = vadd.f32 0.0, %v714
    %v716 = vpop.f32.mrb[0].mxu0
    %717 = vmatprep.mubr.f32.mxu0 0.0
    %718 = vmatmul.mubr.f32.gmra.mrb[0].mxu0 %v616
    %v719 = vpop.f32.mrb[0].mxu0
    %v720 = vadd.f32 0.0, %v719
    %v721 = vpop.f32.mrb[0].mxu0
    %722 = vdwg.mxu0
    %v723 = vadd.f32 %v685, %v695
    %v724 = vadd.f32 %v690, %v700
    %v725 = vadd.f32 %v723, %v705
    %v726 = vadd.f32 %v724, %v710
    %v727 = vadd.f32 %v725, %v715
    %v728 = vadd.f32 %v726, %v720
    %v729 = vadd.f32 %v92, %v727
    %v730 = vadd.f32 %v93, %v728
    %v731 = vld [vmem:[%s6] sm:$0x1]
    %v733 = vlaneseq
    %v734 = vshrl.u32 %v733, 7
    %v735 = vsub.s32 0, %v734
    %v736 = vrot.slane %v731, %v735
    %v738 = vadd.f32 %v729, %v736
    %v739 = vadd.f32 %v730, %v736
    %v740 = vld [vmem:[%s7] sm:$0x1]
    %v741 = vld [vmem:[%s8] sm:$0x1]
    %v742 = vsel %vm106, %v738, 0.0
    %743 = vadd.xlane.f32.xlu0 %v742
    %v744 = vpop.xlane.xlu0 %743
    %v745 = vsel %vm106, %v739, 0.0
    %746 = vadd.xlane.f32.xlu0 %v745
    %v747 = vpop.xlane.xlu0 %746
    %v748 = vmul.f32 %v744, %v119
    %v749 = vmul.f32 %v747, %v119
    %v750 = vsub.f32 %v738, %v748
    %v751 = vsub.f32 %v739, %v749
    %v752 = vmul.f32 %v750, %v750
    %v753 = vmul.f32 %v751, %v751
    %v754 = vsel %vm106, %v752, 0.0
    %755 = vadd.xlane.f32.xlu0 %v754
    %v756 = vpop.xlane.xlu0 %755
    %v757 = vsel %vm106, %v753, 0.0
    %758 = vadd.xlane.f32.xlu0 %v757
    %v759 = vpop.xlane.xlu0 %758
    %v760 = vmul.f32 %v756, %v119
    %v761 = vmul.f32 %v759, %v119
    %v762 = vadd.f32 %v760, 1e-05
    %v763 = vadd.f32 %v761, 1e-05
    %v764 = vrsqrt.pop %v762
    %v765 = vrsqrt.pop %v763
    %v766 = vmul.f32 %v750, %v764
    %v767 = vmul.f32 %v751, %v765
    %v769 = vlaneseq
    %v770 = vshrl.u32 %v769, 7
    %v771 = vsub.s32 0, %v770
    %v772 = vrot.slane %v740, %v771
    %v774 = vmul.f32 %v766, %v772
    %v775 = vmul.f32 %v767, %v772
    %v777 = vlaneseq
    %v778 = vshrl.u32 %v777, 7
    %v779 = vsub.s32 0, %v778
    %v780 = vrot.slane %v741, %v779
    %v782 = vadd.f32 %v774, %v780
    %v783 = vadd.f32 %v775, %v780
    %v784 = vld [vmem:[#allocation7] sm:$0xff]
    %v785 = vld [vmem:[#allocation7 + $0x8] sm:$0xff]
    %v786 = vld [vmem:[#allocation7 + $0x10] sm:$0xff]
    %v787 = vld [vmem:[#allocation7 + $0x18] sm:$0xff]
    %v788 = vld [vmem:[%s10] sm:$0x1]
    %v790 = vlaneseq
    %v791 = vshrl.u32 %v790, 7
    %v792 = vsub.s32 0, %v791
    %v793 = vrot.slane %v788, %v792
    %v796 = vsel %vm106, %v782, 0
    %v799 = vsel %vm106, %v783, 0
    %801 = vmatprep.subr.mxu0 0.0
    %802 = vmatpush1.msra.mxu0 %v784
    %803 = vmatprep.subr.mxu0 0.0
    %804 = vmatpush1.msra.mxu0 %v785
    %805 = vmatprep.subr.mxu0 0.0
    %806 = vmatpush1.msra.mxu0 %v786
    %807 = vmatprep.subr.mxu0 0.0
    %808 = vmatpush1.msra.mxu0 %v787
    %809 = vmatprep.subr.mxu0 0.0
    %810 = vmatpush1.msra.mxu0 0.0
    %811 = vmatprep.subr.mxu0 0.0
    %812 = vmatpush1.msra.mxu0 0.0
    %813 = vmatprep.subr.mxu0 0.0
    %814 = vmatpush1.msra.mxu0 0.0
    %815 = vmatprep.subr.mxu0 0.0
    %816 = vmatpush1.msra.mxu0 0.0
    %817 = vmatprep.subr.mxu0 0.0
    %818 = vmatpush1.msra.mxu0 0.0
    %819 = vmatprep.subr.mxu0 0.0
    %820 = vmatpush1.msra.mxu0 0.0
    %821 = vmatprep.subr.mxu0 0.0
    %822 = vmatpush1.msra.mxu0 0.0
    %823 = vmatprep.subr.mxu0 0.0
    %824 = vmatpush1.msra.mxu0 0.0
    %825 = vmatprep.subr.mxu0 0.0
    %826 = vmatpush1.msra.mxu0 0.0
    %827 = vmatprep.subr.mxu0 0.0
    %828 = vmatpush1.msra.mxu0 0.0
    %829 = vmatprep.subr.mxu0 0.0
    %830 = vmatpush1.msra.mxu0 0.0
    %831 = vmatprep.subr.mxu0 0.0
    %832 = vmatpush1.msra.mxu0 0.0
    %833 = vmatprep.subr.mxu0 0.0
    %834 = vmatpush1.msra.mxu0 0.0
    %835 = vmatprep.subr.mxu0 0.0
    %836 = vmatpush1.msra.mxu0 0.0
    %837 = vmatprep.subr.mxu0 0.0
    %838 = vmatpush1.msra.mxu0 0.0
    %839 = vmatprep.subr.mxu0 0.0
    %840 = vmatpush1.msra.mxu0 0.0
    %841 = vmatprep.subr.mxu0 0.0
    %842 = vmatpush1.msra.mxu0 0.0
    %843 = vmatprep.subr.mxu0 0.0
    %844 = vmatpush1.msra.mxu0 0.0
    %845 = vmatprep.subr.mxu0 0.0
    %846 = vmatpush1.msra.mxu0 0.0
    %847 = vmatprep.subr.mxu0 0.0
    %848 = vmatpush1.msra.mxu0 0.0
    %849 = vmatprep.subr.mxu0 0.0
    %850 = vmatpush1.msra.mxu0 0.0
    %851 = vmatprep.subr.mxu0 0.0
    %852 = vmatpush1.msra.mxu0 0.0
    %853 = vmatprep.subr.mxu0 0.0
    %854 = vmatpush1.msra.mxu0 0.0
    %855 = vmatprep.subr.mxu0 0.0
    %856 = vmatpush1.msra.mxu0 0.0
    %857 = vmatprep.subr.mxu0 0.0
    %858 = vmatpush1.msra.mxu0 0.0
    %859 = vmatprep.subr.mxu0 0.0
    %860 = vmatpush1.msra.mxu0 0.0
    %861 = vmatprep.subr.mxu0 0.0
    %862 = vmatpush1.msra.mxu0 0.0
    %863 = vmatprep.subr.mxu0 0.0
    %864 = vmatpush1.msra.mxu0 0.0
    %865 = vmatprep.mubr.f32.mxu0 0.0
    %866 = vmatmul.mubr.f32.gmra.mrb[0].mxu0 %v796
    %v867 = vpop.f32.mrb[0].mxu0
    %v868 = vadd.f32 %v793, %v867
    %v869 = vpop.f32.mrb[0].mxu0
    %870 = vmatprep.mubr.f32.mxu0 0.0
    %871 = vmatmul.mubr.f32.gmra.mrb[0].mxu0 %v799
    %v872 = vpop.f32.mrb[0].mxu0
    %v873 = vadd.f32 %v793, %v872
    %v874 = vpop.f32.mrb[0].mxu0
    %875 = vdwg.mxu0
    %v876 = vmul.f32 %v868, 0.70710677
    %v877 = vmul.f32 %v873, 0.70710677
    %v878 = vand.u32 2147483647, %v876
    %v879 = vand.u32 2147483647, %v877
    %v880 = vmul.f32 %v878, 0.3275911
    %v881 = vmul.f32 %v879, 0.3275911
    %v882 = vadd.f32 %v880, 1.0
    %v883 = vadd.f32 %v881, 1.0
    %v884 = vrcp.pop %v882
    %v885 = vmul.f32 1.0, %v884
    %v886 = vrcp.pop %v883
    %v887 = vmul.f32 1.0, %v886
    %v888 = vmul.f32 %v885, 1.0614054
    %v889 = vmul.f32 %v887, 1.0614054
    %v890 = vadd.f32 %v888, -1.4531521
    %v891 = vadd.f32 %v889, -1.4531521
    %v892 = vmul.f32 %v885, %v890
    %v893 = vmul.f32 %v887, %v891
    %v894 = vadd.f32 %v892, 1.4214138
    %v895 = vadd.f32 %v893, 1.4214138
    %v896 = vmul.f32 %v885, %v894
    %v897 = vmul.f32 %v887, %v895
    %v898 = vadd.f32 %v896, -0.28449672
    %v899 = vadd.f32 %v897, -0.28449672
    %v900 = vmul.f32 %v885, %v898
    %v901 = vmul.f32 %v887, %v899
    %v902 = vadd.f32 %v900, 0.2548296
    %v903 = vadd.f32 %v901, 0.2548296
    %v904 = vmul.f32 %v885, %v902
    %v905 = vmul.f32 %v887, %v903
    %v906 = vsub.f32 0.0, %v878
    %v907 = vsub.f32 0.0, %v879
    %v908 = vmul.f32 %v906, %v878
    %v909 = vmul.f32 %v907, %v879
    %v910 = vmul.f32 %v908, 1.442695
    %v911 = vpow.pop %v910
    %v912 = vmul.f32 %v909, 1.442695
    %v913 = vpow.pop %v912
    %v914 = vmul.f32 %v904, %v911
    %v915 = vmul.f32 %v905, %v913
    %v916 = vsub.f32 1.0, %v914
    %v917 = vsub.f32 1.0, %v915
    %vm918 = vcmp.ge.f32.partialorder %v876, 0.0
    %vm919 = vcmp.ge.f32.partialorder %v877, 0.0
    %v920 = vsub.f32 0.0, %v916
    %v921 = vsub.f32 0.0, %v917
    %v922 = vsel %vm918, %v916, %v920
    %v923 = vsel %vm919, %v917, %v921
    %v924 = vmul.f32 %v868, 0.5
    %v925 = vmul.f32 %v873, 0.5
    %v926 = vadd.f32 %v922, 1.0
    %v927 = vadd.f32 %v923, 1.0
    %v928 = vmul.f32 %v924, %v926
    %v929 = vmul.f32 %v925, %v927
    %v930 = vld [vmem:[%s11] sm:$0xff]
    %v931 = vld [vmem:[%s11 + $0x8] sm:$0xff]
    %v932 = vld [vmem:[%s11 + $0x10] sm:$0xff]
    %v933 = vld [vmem:[%s11 + $0x18] sm:$0xff]
    %v934 = vld [vmem:[%s11 + $0x20] sm:$0xff]
    %v935 = vld [vmem:[%s11 + $0x28] sm:$0xff]
    %v936 = vld [vmem:[%s11 + $0x30] sm:$0xff]
    %v937 = vld [vmem:[%s11 + $0x38] sm:$0xff]
    %v938 = vld [vmem:[%s12] sm:$0x1]
    %v940 = vlaneseq
    %v941 = vshrl.u32 %v940, 7
    %v942 = vsub.s32 0, %v941
    %v943 = vrot.slane %v938, %v942
    %v946 = vsel %vm505, %v928, 0
    %v949 = vsel %vm505, %v929, 0
    %951 = vmatprep.subr.mxu0 0.0
    %952 = vmatpush1.msra.mxu0 %v930
    %953 = vmatprep.subr.mxu0 0.0
    %954 = vmatpush1.msra.mxu0 %v931
    %955 = vmatprep.subr.mxu0 0.0
    %956 = vmatpush1.msra.mxu0 %v932
    %957 = vmatprep.subr.mxu0 0.0
    %958 = vmatpush1.msra.mxu0 %v933
    %959 = vmatprep.subr.mxu0 0.0
    %960 = vmatpush1.msra.mxu0 %v934
    %961 = vmatprep.subr.mxu0 0.0
    %962 = vmatpush1.msra.mxu0 %v935
    %963 = vmatprep.subr.mxu0 0.0
    %964 = vmatpush1.msra.mxu0 %v936
    %965 = vmatprep.subr.mxu0 0.0
    %966 = vmatpush1.msra.mxu0 %v937
    %967 = vmatprep.subr.mxu0 0.0
    %968 = vmatpush1.msra.mxu0 0.0
    %969 = vmatprep.subr.mxu0 0.0
    %970 = vmatpush1.msra.mxu0 0.0
    %971 = vmatprep.subr.mxu0 0.0
    %972 = vmatpush1.msra.mxu0 0.0
    %973 = vmatprep.subr.mxu0 0.0
    %974 = vmatpush1.msra.mxu0 0.0
    %975 = vmatprep.subr.mxu0 0.0
    %976 = vmatpush1.msra.mxu0 0.0
    %977 = vmatprep.subr.mxu0 0.0
    %978 = vmatpush1.msra.mxu0 0.0
    %979 = vmatprep.subr.mxu0 0.0
    %980 = vmatpush1.msra.mxu0 0.0
    %981 = vmatprep.subr.mxu0 0.0
    %982 = vmatpush1.msra.mxu0 0.0
    %983 = vmatprep.subr.mxu0 0.0
    %984 = vmatpush1.msra.mxu0 0.0
    %985 = vmatprep.subr.mxu0 0.0
    %986 = vmatpush1.msra.mxu0 0.0
    %987 = vmatprep.subr.mxu0 0.0
    %988 = vmatpush1.msra.mxu0 0.0
    %989 = vmatprep.subr.mxu0 0.0
    %990 = vmatpush1.msra.mxu0 0.0
    %991 = vmatprep.subr.mxu0 0.0
    %992 = vmatpush1.msra.mxu0 0.0
    %993 = vmatprep.subr.mxu0 0.0
    %994 = vmatpush1.msra.mxu0 0.0
    %995 = vmatprep.subr.mxu0 0.0
    %996 = vmatpush1.msra.mxu0 0.0
    %997 = vmatprep.subr.mxu0 0.0
    %998 = vmatpush1.msra.mxu0 0.0
    %999 = vmatprep.subr.mxu0 0.0
    %1000 = vmatpush1.msra.mxu0 0.0
    %1001 = vmatprep.subr.mxu0 0.0
    %1002 = vmatpush1.msra.mxu0 0.0
    %1003 = vmatprep.subr.mxu0 0.0
    %1004 = vmatpush1.msra.mxu0 0.0
    %1005 = vmatprep.subr.mxu0 0.0
    %1006 = vmatpush1.msra.mxu0 0.0
    %1007 = vmatprep.subr.mxu0 0.0
    %1008 = vmatpush1.msra.mxu0 0.0
    %1009 = vmatprep.subr.mxu0 0.0
    %1010 = vmatpush1.msra.mxu0 0.0
    %1011 = vmatprep.subr.mxu0 0.0
    %1012 = vmatpush1.msra.mxu0 0.0
    %1013 = vmatprep.subr.mxu0 0.0
    %1014 = vmatpush1.msra.mxu0 0.0
    %1015 = vmatprep.mubr.f32.mxu0 0.0
    %1016 = vmatmul.mubr.f32.gmra.mrb[0].mxu0 %v946
    %v1017 = vpop.f32.mrb[0].mxu0
    %v1018 = vadd.f32 %v943, %v1017
    %v1019 = vpop.f32.mrb[0].mxu0
    %1020 = vmatprep.mubr.f32.mxu0 0.0
    %1021 = vmatmul.mubr.f32.gmra.mrb[0].mxu0 %v949
    %v1022 = vpop.f32.mrb[0].mxu0
    %v1023 = vadd.f32 %v943, %v1022
    %v1024 = vpop.f32.mrb[0].mxu0
    %1025 = vdwg.mxu0
    %v1026 = vadd.f32 %v738, %v1018
    %v1027 = vadd.f32 %v739, %v1023
    %s1028 = scalar_lea.vmem %s3, 1
    %v1029 = vld [vmem:[%s1028] sm:$0x1]
    %s1030 = scalar_lea.vmem [#allocation5], 1
    %v1031 = vld [vmem:[%s1030] sm:$0x1]
    %v1032 = vsel %vm106, %v1026, 0.0
    %1033 = vadd.xlane.f32.xlu0 %v1032
    %v1034 = vpop.xlane.xlu0 %1033
    %v1035 = vsel %vm106, %v1027, 0.0
    %1036 = vadd.xlane.f32.xlu0 %v1035
    %v1037 = vpop.xlane.xlu0 %1036
    %v1038 = vmul.f32 %v1034, %v119
    %v1039 = vmul.f32 %v1037, %v119
    %v1040 = vsub.f32 %v1026, %v1038
    %v1041 = vsub.f32 %v1027, %v1039
    %v1042 = vmul.f32 %v1040, %v1040
    %v1043 = vmul.f32 %v1041, %v1041
    %v1044 = vsel %vm106, %v1042, 0.0
    %1045 = vadd.xlane.f32.xlu0 %v1044
    %v1046 = vpop.xlane.xlu0 %1045
    %v1047 = vsel %vm106, %v1043, 0.0
    %1048 = vadd.xlane.f32.xlu0 %v1047
    %v1049 = vpop.xlane.xlu0 %1048
    %v1050 = vmul.f32 %v1046, %v119
    %v1051 = vmul.f32 %v1049, %v119
    %v1052 = vadd.f32 %v1050, 1e-05
    %v1053 = vadd.f32 %v1051, 1e-05
    %v1054 = vrsqrt.pop %v1052
    %v1055 = vrsqrt.pop %v1053
    %v1056 = vmul.f32 %v1040, %v1054
    %v1057 = vmul.f32 %v1041, %v1055
    %v1059 = vlaneseq
    %v1060 = vshrl.u32 %v1059, 7
    %v1061 = vsub.s32 0, %v1060
    %v1062 = vrot.slane %v1029, %v1061
    %v1064 = vmul.f32 %v1056, %v1062
    %v1065 = vmul.f32 %v1057, %v1062
    %v1066 = vmul.f32 %v158, %v1062
    %v1067 = vmul.f32 %v159, %v1062
    %v1069 = vlaneseq
    %v1070 = vshrl.u32 %v1069, 7
    %v1071 = vsub.s32 0, %v1070
    %v1072 = vrot.slane %v1031, %v1071
    %v1074 = vadd.f32 %v1064, %v1072
    %v1075 = vadd.f32 %v1065, %v1072
    %v1076 = vadd.f32 %v1066, %v1072
    %v1077 = vadd.f32 %v1067, %v1072
    %s1078 = scalar_lea.vmem %s5, 64
    %v1079 = vld [vmem:[%s1078] sm:$0xff]
    %v1080 = vld [vmem:[%s1078 + $0x8] sm:$0xff]
    %v1081 = vld [vmem:[%s1078 + $0x10] sm:$0xff]
    %v1082 = vld [vmem:[%s1078 + $0x18] sm:$0xff]
    %v1083 = vld [vmem:[%s1078 + $0x20] sm:$0xff]
    %v1084 = vld [vmem:[%s1078 + $0x28] sm:$0xff]
    %v1085 = vld [vmem:[%s1078 + $0x30] sm:$0xff]
    %v1086 = vld [vmem:[%s1078 + $0x38] sm:$0xff]
    %v1088 = vsel %vm106, %v1074, 0
    %v1091 = vsel %vm106, %v1075, 0
    %v1094 = vsel %vm106, %v1076, 0
    %v1097 = vsel %vm106, %v1077, 0
    %1099 = vmatprep.subr.mxu0 %v1080
    %1100 = vmatpush1.msra.mxu0 %v1079
    %1101 = vmatprep.subr.mxu0 %v1082
    %1102 = vmatpush1.msra.mxu0 %v1081
    %1103 = vmatprep.subr.mxu0 %v1084
    %1104 = vmatpush1.msra.mxu0 %v1083
    %1105 = vmatprep.subr.mxu0 %v1086
    %1106 = vmatpush1.msra.mxu0 %v1085
    %1107 = vmatprep.subr.mxu0 0.0
    %1108 = vmatpush1.msra.mxu0 0.0
    %1109 = vmatprep.subr.mxu0 0.0
    %1110 = vmatpush1.msra.mxu0 0.0
    %1111 = vmatprep.subr.mxu0 0.0
    %1112 = vmatpush1.msra.mxu0 0.0
    %1113 = vmatprep.subr.mxu0 0.0
    %1114 = vmatpush1.msra.mxu0 0.0
    %1115 = vmatprep.subr.mxu0 0.0
    %1116 = vmatpush1.msra.mxu0 0.0
    %1117 = vmatprep.subr.mxu0 0.0
    %1118 = vmatpush1.msra.mxu0 0.0
    %1119 = vmatprep.subr.mxu0 0.0
    %1120 = vmatpush1.msra.mxu0 0.0
    %1121 = vmatprep.subr.mxu0 0.0
    %1122 = vmatpush1.msra.mxu0 0.0
    %1123 = vmatprep.subr.mxu0 0.0
    %1124 = vmatpush1.msra.mxu0 0.0
    %1125 = vmatprep.subr.mxu0 0.0
    %1126 = vmatpush1.msra.mxu0 0.0
    %1127 = vmatprep.subr.mxu0 0.0
    %1128 = vmatpush1.msra.mxu0 0.0
    %1129 = vmatprep.subr.mxu0 0.0
    %1130 = vmatpush1.msra.mxu0 0.0
    %1131 = vmatprep.subr.mxu0 0.0
    %1132 = vmatpush1.msra.mxu0 0.0
    %1133 = vmatprep.subr.mxu0 0.0
    %1134 = vmatpush1.msra.mxu0 0.0
    %1135 = vmatprep.subr.mxu0 0.0
    %1136 = vmatpush1.msra.mxu0 0.0
    %1137 = vmatprep.subr.mxu0 0.0
    %1138 = vmatpush1.msra.mxu0 0.0
    %1139 = vmatprep.subr.mxu0 0.0
    %1140 = vmatpush1.msra.mxu0 0.0
    %1141 = vmatprep.subr.mxu0 0.0
    %1142 = vmatpush1.msra.mxu0 0.0
    %1143 = vmatprep.subr.mxu0 0.0
    %1144 = vmatpush1.msra.mxu0 0.0
    %1145 = vmatprep.subr.mxu0 0.0
    %1146 = vmatpush1.msra.mxu0 0.0
    %1147 = vmatprep.subr.mxu0 0.0
    %1148 = vmatpush1.msra.mxu0 0.0
    %1149 = vmatprep.subr.mxu0 0.0
    %1150 = vmatpush1.msra.mxu0 0.0
    %1151 = vmatprep.subr.mxu0 0.0
    %1152 = vmatpush1.msra.mxu0 0.0
    %1153 = vmatprep.subr.mxu0 0.0
    %1154 = vmatpush1.msra.mxu0 0.0
    %1155 = vmatprep.subr.mxu0 0.0
    %1156 = vmatpush1.msra.mxu0 0.0
    %1157 = vmatprep.subr.mxu0 0.0
    %1158 = vmatpush1.msra.mxu0 0.0
    %1159 = vmatprep.subr.mxu0 0.0
    %1160 = vmatpush1.msra.mxu0 0.0
    %1161 = vmatprep.subr.mxu0 0.0
    %1162 = vmatpush1.msra.mxu0 0.0
    %1163 = vmatprep.mubr.f32.mxu0 0.0
    %1164 = vmatmul.mubr.f32.gmra.mrb[0].mxu0 %v1088
    %v1165 = vpop.f32.mrb[0].mxu0
    %v1166 = vadd.f32 0.0, %v1165
    %v1167 = vpop.f32.mrb[0].mxu0
    %1168 = vmatprep.mubr.f32.mxu0 0.0
    %1169 = vmatmul.mubr.f32.gmra.mrb[0].mxu0 %v1091
    %v1170 = vpop.f32.mrb[0].mxu0
    %v1171 = vadd.f32 0.0, %v1170
    %v1172 = vpop.f32.mrb[0].mxu0
    %1173 = vmatprep.mubr.f32.mxu0 0.0
    %1174 = vmatmul.mubr.f32.gmra.mrb[0].mxu0 %v1094
    %v1175 = vpop.f32.mrb[0].mxu0
    %v1176 = vadd.f32 0.0, %v1175
    %v1177 = vpop.f32.mrb[0].mxu0
    %v1178 = vadd.f32 0.0, %v1177
    %1179 = vmatprep.mubr.f32.mxu0 0.0
    %1180 = vmatmul.mubr.f32.gmra.mrb[0].mxu0 %v1097
    %v1181 = vpop.f32.mrb[0].mxu0
    %v1182 = vadd.f32 0.0, %v1181
    %v1183 = vpop.f32.mrb[0].mxu0
    %v1184 = vadd.f32 0.0, %v1183
    %1185 = vdwg.mxu0
    %1188 = vrot.lane.b32.xlu0 %v1166, 112
    %v1189 = vpop.permute.xlu0 %1188
    %1190 = vrot.lane.b32.xlu0 %v1171, 112
    %v1191 = vpop.permute.xlu0 %1190
    %1192 = vrot.lane.b32.xlu0 %v1166, 96
    %v1193 = vpop.permute.xlu0 %1192
    %1194 = vrot.lane.b32.xlu0 %v1171, 96
    %v1195 = vpop.permute.xlu0 %1194
    %1196 = vrot.lane.b32.xlu0 %v1166, 80
    %v1197 = vpop.permute.xlu0 %1196
    %1198 = vrot.lane.b32.xlu0 %v1171, 80
    %v1199 = vpop.permute.xlu0 %1198
    %1202 = vrot.lane.b32.xlu0 %v1176, 112
    %v1203 = vpop.permute.xlu0 %1202
    %1204 = vrot.lane.b32.xlu0 %v1182, 112
    %v1205 = vpop.permute.xlu0 %1204
    %1206 = vrot.lane.b32.xlu0 %v1176, 96
    %v1207 = vpop.permute.xlu0 %1206
    %1208 = vrot.lane.b32.xlu0 %v1182, 96
    %v1209 = vpop.permute.xlu0 %1208
    %1210 = vrot.lane.b32.xlu0 %v1176, 80
    %v1211 = vpop.permute.xlu0 %1210
    %1212 = vrot.lane.b32.xlu0 %v1182, 80
    %v1213 = vpop.permute.xlu0 %1212
    %1216 = vrot.lane.b32.xlu0 %v1178, 96
    %v1217 = vpop.permute.xlu0 %1216
    %1218 = vrot.lane.b32.xlu0 %v1184, 96
    %v1219 = vpop.permute.xlu0 %1218
    %1222 = vrot.lane.b32.xlu0 %v1178, 64
    %v1223 = vpop.permute.xlu0 %1222
    %1224 = vrot.lane.b32.xlu0 %v1184, 64
    %v1225 = vpop.permute.xlu0 %1224
    %1228 = vrot.lane.b32.xlu0 %v1178, 32
    %v1229 = vpop.permute.xlu0 %1228
    %1230 = vrot.lane.b32.xlu0 %v1184, 32
    %v1231 = vpop.permute.xlu0 %1230
    %1234 = vrot.lane.b32.xlu0 %v1176, 64
    %v1235 = vpop.permute.xlu0 %1234
    %1236 = vrot.lane.b32.xlu0 %v1182, 64
    %v1237 = vpop.permute.xlu0 %1236
    %1238 = vrot.lane.b32.xlu0 %v1203, 64
    %v1239 = vpop.permute.xlu0 %1238
    %1240 = vrot.lane.b32.xlu0 %v1205, 64
    %v1241 = vpop.permute.xlu0 %1240
    %1242 = vrot.lane.b32.xlu0 %v1207, 64
    %v1243 = vpop.permute.xlu0 %1242
    %1244 = vrot.lane.b32.xlu0 %v1209, 64
    %v1245 = vpop.permute.xlu0 %1244
    %1246 = vrot.lane.b32.xlu0 %v1211, 64
    %v1247 = vpop.permute.xlu0 %1246
    %1248 = vrot.lane.b32.xlu0 %v1213, 64
    %v1249 = vpop.permute.xlu0 %1248
    %v1250 = vsel %vm351, %v1166, 0
    %v1252 = vsel %vm351, %v1171, 0
    %v1254 = vsel %vm351, %v1189, 0
    %v1256 = vsel %vm351, %v1191, 0
    %v1258 = vsel %vm351, %v1193, 0
    %v1260 = vsel %vm351, %v1195, 0
    %v1262 = vsel %vm351, %v1197, 0
    %v1264 = vsel %vm351, %v1199, 0
    %v1266 = vsel %vm351, %v1235, 0
    %v1268 = vsel %vm351, %v1237, 0
    %v1270 = vsel %vm351, %v1239, 0
    %v1272 = vsel %vm351, %v1241, 0
    %v1274 = vsel %vm351, %v1243, 0
    %v1276 = vsel %vm351, %v1245, 0
    %v1278 = vsel %vm351, %v1247, 0
    %v1280 = vsel %vm351, %v1249, 0
    %1282 = vmatprep.subr.mxu0 0.0
    %1283 = vmatpush1.xpose.msra.mxu0 %v1266
    %1284 = vmatprep.subr.mxu0 0.0
    %1285 = vmatpush1.xpose.msra.mxu0 %v1268
    %1286 = vmatprep.subr.mxu0 0.0
    %1287 = vmatpush1.xpose.msra.mxu0 %v1270
    %1288 = vmatprep.subr.mxu0 0.0
    %1289 = vmatpush1.xpose.msra.mxu0 %v1272
    %1290 = vmatprep.subr.mxu0 0.0
    %1291 = vmatpush1.xpose.msra.mxu0 %v1274
    %1292 = vmatprep.subr.mxu0 0.0
    %1293 = vmatpush1.xpose.msra.mxu0 %v1276
    %1294 = vmatprep.subr.mxu0 0.0
    %1295 = vmatpush1.xpose.msra.mxu0 %v1278
    %1296 = vmatprep.subr.mxu0 0.0
    %1297 = vmatpush1.xpose.msra.mxu0 %v1280
    %1298 = vmatprep.subr.mxu0 0.0
    %1299 = vmatpush1.xpose.msra.mxu0 0.0
    %1300 = vmatprep.subr.mxu0 0.0
    %1301 = vmatpush1.xpose.msra.mxu0 0.0
    %1302 = vmatprep.subr.mxu0 0.0
    %1303 = vmatpush1.xpose.msra.mxu0 0.0
    %1304 = vmatprep.subr.mxu0 0.0
    %1305 = vmatpush1.xpose.msra.mxu0 0.0
    %1306 = vmatprep.subr.mxu0 0.0
    %1307 = vmatpush1.xpose.msra.mxu0 0.0
    %1308 = vmatprep.subr.mxu0 0.0
    %1309 = vmatpush1.xpose.msra.mxu0 0.0
    %1310 = vmatprep.subr.mxu0 0.0
    %1311 = vmatpush1.xpose.msra.mxu0 0.0
    %1312 = vmatprep.subr.mxu0 0.0
    %1313 = vmatpush1.xpose.msra.mxu0 0.0
    %1314 = vmatprep.subr.mxu0 0.0
    %1315 = vmatpush1.xpose.msra.mxu0 0.0
    %1316 = vmatprep.subr.mxu0 0.0
    %1317 = vmatpush1.xpose.msra.mxu0 0.0
    %1318 = vmatprep.subr.mxu0 0.0
    %1319 = vmatpush1.xpose.msra.mxu0 0.0
    %1320 = vmatprep.subr.mxu0 0.0
    %1321 = vmatpush1.xpose.msra.mxu0 0.0
    %1322 = vmatprep.subr.mxu0 0.0
    %1323 = vmatpush1.xpose.msra.mxu0 0.0
    %1324 = vmatprep.subr.mxu0 0.0
    %1325 = vmatpush1.xpose.msra.mxu0 0.0
    %1326 = vmatprep.subr.mxu0 0.0
    %1327 = vmatpush1.xpose.msra.mxu0 0.0
    %1328 = vmatprep.subr.mxu0 0.0
    %1329 = vmatpush1.xpose.msra.mxu0 0.0
    %1330 = vmatprep.subr.mxu0 0.0
    %1331 = vmatpush1.xpose.msra.mxu0 0.0
    %1332 = vmatprep.subr.mxu0 0.0
    %1333 = vmatpush1.xpose.msra.mxu0 0.0
    %1334 = vmatprep.subr.mxu0 0.0
    %1335 = vmatpush1.xpose.msra.mxu0 0.0
    %1336 = vmatprep.subr.mxu0 0.0
    %1337 = vmatpush1.xpose.msra.mxu0 0.0
    %1338 = vmatprep.subr.mxu0 0.0
    %1339 = vmatpush1.xpose.msra.mxu0 0.0
    %1340 = vmatprep.subr.mxu0 0.0
    %1341 = vmatpush1.xpose.msra.mxu0 0.0
    %1342 = vmatprep.subr.mxu0 0.0
    %1343 = vmatpush1.xpose.msra.mxu0 0.0
    %1344 = vmatprep.subr.mxu0 0.0
    %1345 = vmatpush1.xpose.msra.mxu0 0.0
    %1346 = vmatprep.mubr.f32.mxu0 0.0
    %1347 = vmatmul.mubr.f32.gmra.mrb[0].mxu0 %v1250
    %v1348 = vpop.f32.mrb[0].mxu0
    %v1349 = vadd.f32 0.0, %v1348
    %v1350 = vpop.f32.mrb[0].mxu0
    %1351 = vmatprep.mubr.f32.mxu0 0.0
    %1352 = vmatmul.mubr.f32.gmra.mrb[0].mxu0 %v1252
    %v1353 = vpop.f32.mrb[0].mxu0
    %v1354 = vadd.f32 0.0, %v1353
    %v1355 = vpop.f32.mrb[0].mxu0
    %1356 = vmatprep.mubr.f32.mxu0 0.0
    %1357 = vmatmul.mubr.f32.gmra.mrb[0].mxu0 %v1254
    %v1358 = vpop.f32.mrb[0].mxu0
    %v1359 = vadd.f32 0.0, %v1358
    %v1360 = vpop.f32.mrb[0].mxu0
    %1361 = vmatprep.mubr.f32.mxu0 0.0
    %1362 = vmatmul.mubr.f32.gmra.mrb[0].mxu0 %v1256
    %v1363 = vpop.f32.mrb[0].mxu0
    %v1364 = vadd.f32 0.0, %v1363
    %v1365 = vpop.f32.mrb[0].mxu0
    %1366 = vmatprep.mubr.f32.mxu0 0.0
    %1367 = vmatmul.mubr.f32.gmra.mrb[0].mxu0 %v1258
    %v1368 = vpop.f32.mrb[0].mxu0
    %v1369 = vadd.f32 0.0, %v1368
    %v1370 = vpop.f32.mrb[0].mxu0
    %1371 = vmatprep.mubr.f32.mxu0 0.0
    %1372 = vmatmul.mubr.f32.gmra.mrb[0].mxu0 %v1260
    %v1373 = vpop.f32.mrb[0].mxu0
    %v1374 = vadd.f32 0.0, %v1373
    %v1375 = vpop.f32.mrb[0].mxu0
    %1376 = vmatprep.mubr.f32.mxu0 0.0
    %1377 = vmatmul.mubr.f32.gmra.mrb[0].mxu0 %v1262
    %v1378 = vpop.f32.mrb[0].mxu0
    %v1379 = vadd.f32 0.0, %v1378
    %v1380 = vpop.f32.mrb[0].mxu0
    %1381 = vmatprep.mubr.f32.mxu0 0.0
    %1382 = vmatmul.mubr.f32.gmra.mrb[0].mxu0 %v1264
    %v1383 = vpop.f32.mrb[0].mxu0
    %v1384 = vadd.f32 0.0, %v1383
    %v1385 = vpop.f32.mrb[0].mxu0
    %1386 = vdwg.mxu0
    %v1387 = vmul.f32 %v1349, 0.25
    %v1388 = vmul.f32 %v1354, 0.25
    %v1389 = vmul.f32 %v1359, 0.25
    %v1390 = vmul.f32 %v1364, 0.25
    %v1391 = vmul.f32 %v1369, 0.25
    %v1392 = vmul.f32 %v1374, 0.25
    %v1393 = vmul.f32 %v1379, 0.25
    %v1394 = vmul.f32 %v1384, 0.25
    %v1395 = vadd.f32 %v1387, %v96
    %v1396 = vadd.f32 %v1388, %v97
    %v1397 = vadd.f32 %v1389, %v98
    %v1398 = vadd.f32 %v1390, %v99
    %v1399 = vadd.f32 %v1391, %v100
    %v1400 = vadd.f32 %v1392, %v101
    %v1401 = vadd.f32 %v1393, %v102
    %v1402 = vadd.f32 %v1394, %v103
    %v1403 = vsel %vm505, %v1395, -inf
    %1404 = vmax.xlane.f32.xlu0 %v1403
    %v1405 = vpop.xlane.xlu0 %1404
    %v1406 = vsel %vm505, %v1396, -inf
    %1407 = vmax.xlane.f32.xlu0 %v1406
    %v1408 = vpop.xlane.xlu0 %1407
    %v1409 = vsel %vm505, %v1397, -inf
    %1410 = vmax.xlane.f32.xlu0 %v1409
    %v1411 = vpop.xlane.xlu0 %1410
    %v1412 = vsel %vm505, %v1398, -inf
    %1413 = vmax.xlane.f32.xlu0 %v1412
    %v1414 = vpop.xlane.xlu0 %1413
    %v1415 = vsel %vm505, %v1399, -inf
    %1416 = vmax.xlane.f32.xlu0 %v1415
    %v1417 = vpop.xlane.xlu0 %1416
    %v1418 = vsel %vm505, %v1400, -inf
    %1419 = vmax.xlane.f32.xlu0 %v1418
    %v1420 = vpop.xlane.xlu0 %1419
    %v1421 = vsel %vm505, %v1401, -inf
    %1422 = vmax.xlane.f32.xlu0 %v1421
    %v1423 = vpop.xlane.xlu0 %1422
    %v1424 = vsel %vm505, %v1402, -inf
    %1425 = vmax.xlane.f32.xlu0 %v1424
    %v1426 = vpop.xlane.xlu0 %1425
    %v1427 = vsub.f32 %v1395, %v1405
    %v1428 = vsub.f32 %v1396, %v1408
    %v1429 = vsub.f32 %v1397, %v1411
    %v1430 = vsub.f32 %v1398, %v1414
    %v1431 = vsub.f32 %v1399, %v1417
    %v1432 = vsub.f32 %v1400, %v1420
    %v1433 = vsub.f32 %v1401, %v1423
    %v1434 = vsub.f32 %v1402, %v1426
    %v1435 = vmul.f32 %v1427, 1.442695
    %v1436 = vpow.pop %v1435
    %v1437 = vmul.f32 %v1428, 1.442695
    %v1438 = vpow.pop %v1437
    %v1439 = vmul.f32 %v1429, 1.442695
    %v1440 = vpow.pop %v1439
    %v1441 = vmul.f32 %v1430, 1.442695
    %v1442 = vpow.pop %v1441
    %v1443 = vmul.f32 %v1431, 1.442695
    %v1444 = vpow.pop %v1443
    %v1445 = vmul.f32 %v1432, 1.442695
    %v1446 = vpow.pop %v1445
    %v1447 = vmul.f32 %v1433, 1.442695
    %v1448 = vpow.pop %v1447
    %v1449 = vmul.f32 %v1434, 1.442695
    %v1450 = vpow.pop %v1449
    %v1451 = vsel %vm505, %v1436, 0.0
    %1452 = vadd.xlane.f32.xlu0 %v1451
    %v1453 = vpop.xlane.xlu0 %1452
    %v1454 = vsel %vm505, %v1438, 0.0
    %1455 = vadd.xlane.f32.xlu0 %v1454
    %v1456 = vpop.xlane.xlu0 %1455
    %v1457 = vsel %vm505, %v1440, 0.0
    %1458 = vadd.xlane.f32.xlu0 %v1457
    %v1459 = vpop.xlane.xlu0 %1458
    %v1460 = vsel %vm505, %v1442, 0.0
    %1461 = vadd.xlane.f32.xlu0 %v1460
    %v1462 = vpop.xlane.xlu0 %1461
    %v1463 = vsel %vm505, %v1444, 0.0
    %1464 = vadd.xlane.f32.xlu0 %v1463
    %v1465 = vpop.xlane.xlu0 %1464
    %v1466 = vsel %vm505, %v1446, 0.0
    %1467 = vadd.xlane.f32.xlu0 %v1466
    %v1468 = vpop.xlane.xlu0 %1467
    %v1469 = vsel %vm505, %v1448, 0.0
    %1470 = vadd.xlane.f32.xlu0 %v1469
    %v1471 = vpop.xlane.xlu0 %1470
    %v1472 = vsel %vm505, %v1450, 0.0
    %1473 = vadd.xlane.f32.xlu0 %v1472
    %v1474 = vpop.xlane.xlu0 %1473
    %v1475 = vrcp.pop %v1453
    %v1476 = vrcp.pop %v1456
    %v1477 = vrcp.pop %v1459
    %v1478 = vrcp.pop %v1462
    %v1479 = vrcp.pop %v1465
    %v1480 = vrcp.pop %v1468
    %v1481 = vrcp.pop %v1471
    %v1482 = vrcp.pop %v1474
    %v1483 = vmul.f32 %v1436, %v1475
    %v1484 = vmul.f32 %v1438, %v1476
    %v1485 = vmul.f32 %v1440, %v1477
    %v1486 = vmul.f32 %v1442, %v1478
    %v1487 = vmul.f32 %v1444, %v1479
    %v1488 = vmul.f32 %v1446, %v1480
    %v1489 = vmul.f32 %v1448, %v1481
    %v1490 = vmul.f32 %v1450, %v1482
    %v1492 = vsel %vm505, %v1483, 0
    %v1495 = vsel %vm505, %v1484, 0
    %v1498 = vsel %vm505, %v1485, 0
    %v1501 = vsel %vm505, %v1486, 0
    %v1504 = vsel %vm505, %v1487, 0
    %v1507 = vsel %vm505, %v1488, 0
    %v1510 = vsel %vm505, %v1489, 0
    %v1513 = vsel %vm505, %v1490, 0
    %1515 = vmatprep.subr.mxu0 0.0
    %1516 = vmatpush1.msra.mxu0 %v1178
    %1517 = vmatprep.subr.mxu0 0.0
    %1518 = vmatpush1.msra.mxu0 %v1184
    %1519 = vmatprep.subr.mxu0 0.0
    %1520 = vmatpush1.msra.mxu0 %v1217
    %1521 = vmatprep.subr.mxu0 0.0
    %1522 = vmatpush1.msra.mxu0 %v1219
    %1523 = vmatprep.subr.mxu0 0.0
    %1524 = vmatpush1.msra.mxu0 %v1223
    %1525 = vmatprep.subr.mxu0 0.0
    %1526 = vmatpush1.msra.mxu0 %v1225
    %1527 = vmatprep.subr.mxu0 0.0
    %1528 = vmatpush1.msra.mxu0 %v1229
    %1529 = vmatprep.subr.mxu0 0.0
    %1530 = vmatpush1.msra.mxu0 %v1231
    %1531 = vmatprep.subr.mxu0 0.0
    %1532 = vmatpush1.msra.mxu0 0.0
    %1533 = vmatprep.subr.mxu0 0.0
    %1534 = vmatpush1.msra.mxu0 0.0
    %1535 = vmatprep.subr.mxu0 0.0
    %1536 = vmatpush1.msra.mxu0 0.0
    %1537 = vmatprep.subr.mxu0 0.0
    %1538 = vmatpush1.msra.mxu0 0.0
    %1539 = vmatprep.subr.mxu0 0.0
    %1540 = vmatpush1.msra.mxu0 0.0
    %1541 = vmatprep.subr.mxu0 0.0
    %1542 = vmatpush1.msra.mxu0 0.0
    %1543 = vmatprep.subr.mxu0 0.0
    %1544 = vmatpush1.msra.mxu0 0.0
    %1545 = vmatprep.subr.mxu0 0.0
    %1546 = vmatpush1.msra.mxu0 0.0
    %1547 = vmatprep.subr.mxu0 0.0
    %1548 = vmatpush1.msra.mxu0 0.0
    %1549 = vmatprep.subr.mxu0 0.0
    %1550 = vmatpush1.msra.mxu0 0.0
    %1551 = vmatprep.subr.mxu0 0.0
    %1552 = vmatpush1.msra.mxu0 0.0
    %1553 = vmatprep.subr.mxu0 0.0
    %1554 = vmatpush1.msra.mxu0 0.0
    %1555 = vmatprep.subr.mxu0 0.0
    %1556 = vmatpush1.msra.mxu0 0.0
    %1557 = vmatprep.subr.mxu0 0.0
    %1558 = vmatpush1.msra.mxu0 0.0
    %1559 = vmatprep.subr.mxu0 0.0
    %1560 = vmatpush1.msra.mxu0 0.0
    %1561 = vmatprep.subr.mxu0 0.0
    %1562 = vmatpush1.msra.mxu0 0.0
    %1563 = vmatprep.subr.mxu0 0.0
    %1564 = vmatpush1.msra.mxu0 0.0
    %1565 = vmatprep.subr.mxu0 0.0
    %1566 = vmatpush1.msra.mxu0 0.0
    %1567 = vmatprep.subr.mxu0 0.0
    %1568 = vmatpush1.msra.mxu0 0.0
    %1569 = vmatprep.subr.mxu0 0.0
    %1570 = vmatpush1.msra.mxu0 0.0
    %1571 = vmatprep.subr.mxu0 0.0
    %1572 = vmatpush1.msra.mxu0 0.0
    %1573 = vmatprep.subr.mxu0 0.0
    %1574 = vmatpush1.msra.mxu0 0.0
    %1575 = vmatprep.subr.mxu0 0.0
    %1576 = vmatpush1.msra.mxu0 0.0
    %1577 = vmatprep.subr.mxu0 0.0
    %1578 = vmatpush1.msra.mxu0 0.0
    %1579 = vmatprep.mubr.f32.mxu0 0.0
    %1580 = vmatmul.mubr.f32.gmra.mrb[0].mxu0 %v1492
    %v1581 = vpop.f32.mrb[0].mxu0
    %v1582 = vadd.f32 0.0, %v1581
    %v1583 = vpop.f32.mrb[0].mxu0
    %1584 = vmatprep.mubr.f32.mxu0 0.0
    %1585 = vmatmul.mubr.f32.gmra.mrb[0].mxu0 %v1495
    %v1586 = vpop.f32.mrb[0].mxu0
    %v1587 = vadd.f32 0.0, %v1586
    %v1588 = vpop.f32.mrb[0].mxu0
    %1589 = vmatprep.mubr.f32.mxu0 0.0
    %1590 = vmatmul.mubr.f32.gmra.mrb[0].mxu0 %v1498
    %v1591 = vpop.f32.mrb[0].mxu0
    %v1592 = vadd.f32 0.0, %v1591
    %v1593 = vpop.f32.mrb[0].mxu0
    %1594 = vmatprep.mubr.f32.mxu0 0.0
    %1595 = vmatmul.mubr.f32.gmra.mrb[0].mxu0 %v1501
    %v1596 = vpop.f32.mrb[0].mxu0
    %v1597 = vadd.f32 0.0, %v1596
    %v1598 = vpop.f32.mrb[0].mxu0
    %1599 = vmatprep.mubr.f32.mxu0 0.0
    %1600 = vmatmul.mubr.f32.gmra.mrb[0].mxu0 %v1504
    %v1601 = vpop.f32.mrb[0].mxu0
    %v1602 = vadd.f32 0.0, %v1601
    %v1603 = vpop.f32.mrb[0].mxu0
    %1604 = vmatprep.mubr.f32.mxu0 0.0
    %1605 = vmatmul.mubr.f32.gmra.mrb[0].mxu0 %v1507
    %v1606 = vpop.f32.mrb[0].mxu0
    %v1607 = vadd.f32 0.0, %v1606
    %v1608 = vpop.f32.mrb[0].mxu0
    %1609 = vmatprep.mubr.f32.mxu0 0.0
    %1610 = vmatmul.mubr.f32.gmra.mrb[0].mxu0 %v1510
    %v1611 = vpop.f32.mrb[0].mxu0
    %v1612 = vadd.f32 0.0, %v1611
    %v1613 = vpop.f32.mrb[0].mxu0
    %1614 = vmatprep.mubr.f32.mxu0 0.0
    %1615 = vmatmul.mubr.f32.gmra.mrb[0].mxu0 %v1513
    %v1616 = vpop.f32.mrb[0].mxu0
    %v1617 = vadd.f32 0.0, %v1616
    %v1618 = vpop.f32.mrb[0].mxu0
    %1619 = vdwg.mxu0
    %v1620 = vadd.f32 %v1582, %v1592
    %v1621 = vadd.f32 %v1587, %v1597
    %v1622 = vadd.f32 %v1620, %v1602
    %v1623 = vadd.f32 %v1621, %v1607
    %v1624 = vadd.f32 %v1622, %v1612
    %v1625 = vadd.f32 %v1623, %v1617
    %v1626 = vadd.f32 %v1026, %v1624
    %v1627 = vadd.f32 %v1027, %v1625
    %s1628 = scalar_lea.vmem %s6, 1
    %v1629 = vld [vmem:[%s1628] sm:$0x1]
    %v1631 = vlaneseq
    %v1632 = vshrl.u32 %v1631, 7
    %v1633 = vsub.s32 0, %v1632
    %v1634 = vrot.slane %v1629, %v1633
    %v1636 = vadd.f32 %v1626, %v1634
    %v1637 = vadd.f32 %v1627, %v1634
    %s1638 = scalar_lea.vmem %s7, 1
    %v1639 = vld [vmem:[%s1638] sm:$0x1]
    %s1640 = scalar_lea.vmem %s8, 1
    %v1641 = vld [vmem:[%s1640] sm:$0x1]
    %v1642 = vsel %vm106, %v1636, 0.0
    %1643 = vadd.xlane.f32.xlu0 %v1642
    %v1644 = vpop.xlane.xlu0 %1643
    %v1645 = vsel %vm106, %v1637, 0.0
    %1646 = vadd.xlane.f32.xlu0 %v1645
    %v1647 = vpop.xlane.xlu0 %1646
    %v1648 = vmul.f32 %v1644, %v119
    %v1649 = vmul.f32 %v1647, %v119
    %v1650 = vsub.f32 %v1636, %v1648
    %v1651 = vsub.f32 %v1637, %v1649
    %v1652 = vmul.f32 %v1650, %v1650
    %v1653 = vmul.f32 %v1651, %v1651
    %v1654 = vsel %vm106, %v1652, 0.0
    %1655 = vadd.xlane.f32.xlu0 %v1654
    %v1656 = vpop.xlane.xlu0 %1655
    %v1657 = vsel %vm106, %v1653, 0.0
    %1658 = vadd.xlane.f32.xlu0 %v1657
    %v1659 = vpop.xlane.xlu0 %1658
    %v1660 = vmul.f32 %v1656, %v119
    %v1661 = vmul.f32 %v1659, %v119
    %v1662 = vadd.f32 %v1660, 1e-05
    %v1663 = vadd.f32 %v1661, 1e-05
    %v1664 = vrsqrt.pop %v1662
    %v1665 = vrsqrt.pop %v1663
    %v1666 = vmul.f32 %v1650, %v1664
    %v1667 = vmul.f32 %v1651, %v1665
    %v1669 = vlaneseq
    %v1670 = vshrl.u32 %v1669, 7
    %v1671 = vsub.s32 0, %v1670
    %v1672 = vrot.slane %v1639, %v1671
    %v1674 = vmul.f32 %v1666, %v1672
    %v1675 = vmul.f32 %v1667, %v1672
    %v1677 = vlaneseq
    %v1678 = vshrl.u32 %v1677, 7
    %v1679 = vsub.s32 0, %v1678
    %v1680 = vrot.slane %v1641, %v1679
    %v1682 = vadd.f32 %v1674, %v1680
    %v1683 = vadd.f32 %v1675, %v1680
    %s1684 = scalar_lea.vmem [#allocation7], 32
    %v1685 = vld [vmem:[%s1684] sm:$0xff]
    %v1686 = vld [vmem:[%s1684 + $0x8] sm:$0xff]
    %v1687 = vld [vmem:[%s1684 + $0x10] sm:$0xff]
    %v1688 = vld [vmem:[%s1684 + $0x18] sm:$0xff]
    %s1689 = scalar_lea.vmem %s10, 1
    %v1690 = vld [vmem:[%s1689] sm:$0x1]
    %v1692 = vlaneseq
    %v1693 = vshrl.u32 %v1692, 7
    %v1694 = vsub.s32 0, %v1693
    %v1695 = vrot.slane %v1690, %v1694
    %v1698 = vsel %vm106, %v1682, 0
    %v1701 = vsel %vm106, %v1683, 0
    %1703 = vmatprep.subr.mxu0 0.0
    %1704 = vmatpush1.msra.mxu0 %v1685
    %1705 = vmatprep.subr.mxu0 0.0
    %1706 = vmatpush1.msra.mxu0 %v1686
    %1707 = vmatprep.subr.mxu0 0.0
    %1708 = vmatpush1.msra.mxu0 %v1687
    %1709 = vmatprep.subr.mxu0 0.0
    %1710 = vmatpush1.msra.mxu0 %v1688
    %1711 = vmatprep.subr.mxu0 0.0
    %1712 = vmatpush1.msra.mxu0 0.0
    %1713 = vmatprep.subr.mxu0 0.0
    %1714 = vmatpush1.msra.mxu0 0.0
    %1715 = vmatprep.subr.mxu0 0.0
    %1716 = vmatpush1.msra.mxu0 0.0
    %1717 = vmatprep.subr.mxu0 0.0
    %1718 = vmatpush1.msra.mxu0 0.0
    %1719 = vmatprep.subr.mxu0 0.0
    %1720 = vmatpush1.msra.mxu0 0.0
    %1721 = vmatprep.subr.mxu0 0.0
    %1722 = vmatpush1.msra.mxu0 0.0
    %1723 = vmatprep.subr.mxu0 0.0
    %1724 = vmatpush1.msra.mxu0 0.0
    %1725 = vmatprep.subr.mxu0 0.0
    %1726 = vmatpush1.msra.mxu0 0.0
    %1727 = vmatprep.subr.mxu0 0.0
    %1728 = vmatpush1.msra.mxu0 0.0
    %1729 = vmatprep.subr.mxu0 0.0
    %1730 = vmatpush1.msra.mxu0 0.0
    %1731 = vmatprep.subr.mxu0 0.0
    %1732 = vmatpush1.msra.mxu0 0.0
    %1733 = vmatprep.subr.mxu0 0.0
    %1734 = vmatpush1.msra.mxu0 0.0
    %1735 = vmatprep.subr.mxu0 0.0
    %1736 = vmatpush1.msra.mxu0 0.0
    %1737 = vmatprep.subr.mxu0 0.0
    %1738 = vmatpush1.msra.mxu0 0.0
    %1739 = vmatprep.subr.mxu0 0.0
    %1740 = vmatpush1.msra.mxu0 0.0
    %1741 = vmatprep.subr.mxu0 0.0
    %1742 = vmatpush1.msra.mxu0 0.0
    %1743 = vmatprep.subr.mxu0 0.0
    %1744 = vmatpush1.msra.mxu0 0.0
    %1745 = vmatprep.subr.mxu0 0.0
    %1746 = vmatpush1.msra.mxu0 0.0
    %1747 = vmatprep.subr.mxu0 0.0
    %1748 = vmatpush1.msra.mxu0 0.0
    %1749 = vmatprep.subr.mxu0 0.0
    %1750 = vmatpush1.msra.mxu0 0.0
    %1751 = vmatprep.subr.mxu0 0.0
    %1752 = vmatpush1.msra.mxu0 0.0
    %1753 = vmatprep.subr.mxu0 0.0
    %1754 = vmatpush1.msra.mxu0 0.0
    %1755 = vmatprep.subr.mxu0 0.0
    %1756 = vmatpush1.msra.mxu0 0.0
    %1757 = vmatprep.subr.mxu0 0.0
    %1758 = vmatpush1.msra.mxu0 0.0
    %1759 = vmatprep.subr.mxu0 0.0
    %1760 = vmatpush1.msra.mxu0 0.0
    %1761 = vmatprep.subr.mxu0 0.0
    %1762 = vmatpush1.msra.mxu0 0.0
    %1763 = vmatprep.subr.mxu0 0.0
    %1764 = vmatpush1.msra.mxu0 0.0
    %1765 = vmatprep.subr.mxu0 0.0
    %1766 = vmatpush1.msra.mxu0 0.0
    %1767 = vmatprep.mubr.f32.mxu0 0.0
    %1768 = vmatmul.mubr.f32.gmra.mrb[0].mxu0 %v1698
    %v1769 = vpop.f32.mrb[0].mxu0
    %v1770 = vadd.f32 %v1695, %v1769
    %v1771 = vpop.f32.mrb[0].mxu0
    %1772 = vmatprep.mubr.f32.mxu0 0.0
    %1773 = vmatmul.mubr.f32.gmra.mrb[0].mxu0 %v1701
    %v1774 = vpop.f32.mrb[0].mxu0
    %v1775 = vadd.f32 %v1695, %v1774
    %v1776 = vpop.f32.mrb[0].mxu0
    %1777 = vdwg.mxu0
    %v1778 = vmul.f32 %v1770, 0.70710677
    %v1779 = vmul.f32 %v1775, 0.70710677
    %v1780 = vand.u32 2147483647, %v1778
    %v1781 = vand.u32 2147483647, %v1779
    %v1782 = vmul.f32 %v1780, 0.3275911
    %v1783 = vmul.f32 %v1781, 0.3275911
    %v1784 = vadd.f32 %v1782, 1.0
    %v1785 = vadd.f32 %v1783, 1.0
    %v1786 = vrcp.pop %v1784
    %v1787 = vmul.f32 1.0, %v1786
    %v1788 = vrcp.pop %v1785
    %v1789 = vmul.f32 1.0, %v1788
    %v1790 = vmul.f32 %v1787, 1.0614054
    %v1791 = vmul.f32 %v1789, 1.0614054
    %v1792 = vadd.f32 %v1790, -1.4531521
    %v1793 = vadd.f32 %v1791, -1.4531521
    %v1794 = vmul.f32 %v1787, %v1792
    %v1795 = vmul.f32 %v1789, %v1793
    %v1796 = vadd.f32 %v1794, 1.4214138
    %v1797 = vadd.f32 %v1795, 1.4214138
    %v1798 = vmul.f32 %v1787, %v1796
    %v1799 = vmul.f32 %v1789, %v1797
    %v1800 = vadd.f32 %v1798, -0.28449672
    %v1801 = vadd.f32 %v1799, -0.28449672
    %v1802 = vmul.f32 %v1787, %v1800
    %v1803 = vmul.f32 %v1789, %v1801
    %v1804 = vadd.f32 %v1802, 0.2548296
    %v1805 = vadd.f32 %v1803, 0.2548296
    %v1806 = vmul.f32 %v1787, %v1804
    %v1807 = vmul.f32 %v1789, %v1805
    %v1808 = vsub.f32 0.0, %v1780
    %v1809 = vsub.f32 0.0, %v1781
    %v1810 = vmul.f32 %v1808, %v1780
    %v1811 = vmul.f32 %v1809, %v1781
    %v1812 = vmul.f32 %v1810, 1.442695
    %v1813 = vpow.pop %v1812
    %v1814 = vmul.f32 %v1811, 1.442695
    %v1815 = vpow.pop %v1814
    %v1816 = vmul.f32 %v1806, %v1813
    %v1817 = vmul.f32 %v1807, %v1815
    %v1818 = vsub.f32 1.0, %v1816
    %v1819 = vsub.f32 1.0, %v1817
    %vm1820 = vcmp.ge.f32.partialorder %v1778, 0.0
    %vm1821 = vcmp.ge.f32.partialorder %v1779, 0.0
    %v1822 = vsub.f32 0.0, %v1818
    %v1823 = vsub.f32 0.0, %v1819
    %v1824 = vsel %vm1820, %v1818, %v1822
    %v1825 = vsel %vm1821, %v1819, %v1823
    %v1826 = vmul.f32 %v1770, 0.5
    %v1827 = vmul.f32 %v1775, 0.5
    %v1828 = vadd.f32 %v1824, 1.0
    %v1829 = vadd.f32 %v1825, 1.0
    %v1830 = vmul.f32 %v1826, %v1828
    %v1831 = vmul.f32 %v1827, %v1829
    %s1832 = scalar_lea.vmem %s11, 64
    %v1833 = vld [vmem:[%s1832] sm:$0xff]
    %v1834 = vld [vmem:[%s1832 + $0x8] sm:$0xff]
    %v1835 = vld [vmem:[%s1832 + $0x10] sm:$0xff]
    %v1836 = vld [vmem:[%s1832 + $0x18] sm:$0xff]
    %v1837 = vld [vmem:[%s1832 + $0x20] sm:$0xff]
    %v1838 = vld [vmem:[%s1832 + $0x28] sm:$0xff]
    %v1839 = vld [vmem:[%s1832 + $0x30] sm:$0xff]
    %v1840 = vld [vmem:[%s1832 + $0x38] sm:$0xff]
    %s1841 = scalar_lea.vmem %s12, 1
    %v1842 = vld [vmem:[%s1841] sm:$0x1]
    %v1844 = vlaneseq
    %v1845 = vshrl.u32 %v1844, 7
    %v1846 = vsub.s32 0, %v1845
    %v1847 = vrot.slane %v1842, %v1846
    %v1850 = vsel %vm505, %v1830, 0
    %v1853 = vsel %vm505, %v1831, 0
    %1855 = vmatprep.subr.mxu0 0.0
    %1856 = vmatpush1.msra.mxu0 %v1833
    %1857 = vmatprep.subr.mxu0 0.0
    %1858 = vmatpush1.msra.mxu0 %v1834
    %1859 = vmatprep.subr.mxu0 0.0
    %1860 = vmatpush1.msra.mxu0 %v1835
    %1861 = vmatprep.subr.mxu0 0.0
    %1862 = vmatpush1.msra.mxu0 %v1836
    %1863 = vmatprep.subr.mxu0 0.0
    %1864 = vmatpush1.msra.mxu0 %v1837
    %1865 = vmatprep.subr.mxu0 0.0
    %1866 = vmatpush1.msra.mxu0 %v1838
    %1867 = vmatprep.subr.mxu0 0.0
    %1868 = vmatpush1.msra.mxu0 %v1839
    %1869 = vmatprep.subr.mxu0 0.0
    %1870 = vmatpush1.msra.mxu0 %v1840
    %1871 = vmatprep.subr.mxu0 0.0
    %1872 = vmatpush1.msra.mxu0 0.0
    %1873 = vmatprep.subr.mxu0 0.0
    %1874 = vmatpush1.msra.mxu0 0.0
    %1875 = vmatprep.subr.mxu0 0.0
    %1876 = vmatpush1.msra.mxu0 0.0
    %1877 = vmatprep.subr.mxu0 0.0
    %1878 = vmatpush1.msra.mxu0 0.0
    %1879 = vmatprep.subr.mxu0 0.0
    %1880 = vmatpush1.msra.mxu0 0.0
    %1881 = vmatprep.subr.mxu0 0.0
    %1882 = vmatpush1.msra.mxu0 0.0
    %1883 = vmatprep.subr.mxu0 0.0
    %1884 = vmatpush1.msra.mxu0 0.0
    %1885 = vmatprep.subr.mxu0 0.0
    %1886 = vmatpush1.msra.mxu0 0.0
    %1887 = vmatprep.subr.mxu0 0.0
    %1888 = vmatpush1.msra.mxu0 0.0
    %1889 = vmatprep.subr.mxu0 0.0
    %1890 = vmatpush1.msra.mxu0 0.0
    %1891 = vmatprep.subr.mxu0 0.0
    %1892 = vmatpush1.msra.mxu0 0.0
    %1893 = vmatprep.subr.mxu0 0.0
    %1894 = vmatpush1.msra.mxu0 0.0
    %1895 = vmatprep.subr.mxu0 0.0
    %1896 = vmatpush1.msra.mxu0 0.0
    %1897 = vmatprep.subr.mxu0 0.0
    %1898 = vmatpush1.msra.mxu0 0.0
    %1899 = vmatprep.subr.mxu0 0.0
    %1900 = vmatpush1.msra.mxu0 0.0
    %1901 = vmatprep.subr.mxu0 0.0
    %1902 = vmatpush1.msra.mxu0 0.0
    %1903 = vmatprep.subr.mxu0 0.0
    %1904 = vmatpush1.msra.mxu0 0.0
    %1905 = vmatprep.subr.mxu0 0.0
    %1906 = vmatpush1.msra.mxu0 0.0
    %1907 = vmatprep.subr.mxu0 0.0
    %1908 = vmatpush1.msra.mxu0 0.0
    %1909 = vmatprep.subr.mxu0 0.0
    %1910 = vmatpush1.msra.mxu0 0.0
    %1911 = vmatprep.subr.mxu0 0.0
    %1912 = vmatpush1.msra.mxu0 0.0
    %1913 = vmatprep.subr.mxu0 0.0
    %1914 = vmatpush1.msra.mxu0 0.0
    %1915 = vmatprep.subr.mxu0 0.0
    %1916 = vmatpush1.msra.mxu0 0.0
    %1917 = vmatprep.subr.mxu0 0.0
    %1918 = vmatpush1.msra.mxu0 0.0
    %1919 = vmatprep.mubr.f32.mxu0 0.0
    %1920 = vmatmul.mubr.f32.gmra.mrb[0].mxu0 %v1850
    %v1921 = vpop.f32.mrb[0].mxu0
    %v1922 = vadd.f32 %v1847, %v1921
    %v1923 = vpop.f32.mrb[0].mxu0
    %1924 = vmatprep.mubr.f32.mxu0 0.0
    %1925 = vmatmul.mubr.f32.gmra.mrb[0].mxu0 %v1853
    %v1926 = vpop.f32.mrb[0].mxu0
    %v1927 = vadd.f32 %v1847, %v1926
    %v1928 = vpop.f32.mrb[0].mxu0
    %1929 = vdwg.mxu0
    %v1930 = vadd.f32 %v1636, %v1922
    %v1931 = vadd.f32 %v1637, %v1927
    %v1932 = vld [vmem:[%s13] sm:$0x1]
    %v1933 = vld [vmem:[%s14] sm:$0x1]
    %v1934 = vsel %vm106, %v1930, 0.0
    %1935 = vadd.xlane.f32.xlu0 %v1934
    %v1936 = vpop.xlane.xlu0 %1935
    %v1937 = vsel %vm106, %v1931, 0.0
    %1938 = vadd.xlane.f32.xlu0 %v1937
    %v1939 = vpop.xlane.xlu0 %1938
    %v1940 = vmul.f32 %v1936, %v119
    %v1941 = vmul.f32 %v1939, %v119
    %v1942 = vsub.f32 %v1930, %v1940
    %v1943 = vsub.f32 %v1931, %v1941
    %v1944 = vmul.f32 %v1942, %v1942
    %v1945 = vmul.f32 %v1943, %v1943
    %v1946 = vsel %vm106, %v1944, 0.0
    %1947 = vadd.xlane.f32.xlu0 %v1946
    %v1948 = vpop.xlane.xlu0 %1947
    %v1949 = vsel %vm106, %v1945, 0.0
    %1950 = vadd.xlane.f32.xlu0 %v1949
    %v1951 = vpop.xlane.xlu0 %1950
    %v1952 = vmul.f32 %v1948, %v119
    %v1953 = vmul.f32 %v1951, %v119
    %v1954 = vadd.f32 %v1952, 1e-05
    %v1955 = vadd.f32 %v1953, 1e-05
    %v1956 = vrsqrt.pop %v1954
    %v1957 = vrsqrt.pop %v1955
    %v1958 = vmul.f32 %v1942, %v1956
    %v1959 = vmul.f32 %v1943, %v1957
    %v1961 = vlaneseq
    %v1962 = vshrl.u32 %v1961, 7
    %v1963 = vsub.s32 0, %v1962
    %v1964 = vrot.slane %v1932, %v1963
    %v1966 = vmul.f32 %v1958, %v1964
    %v1967 = vmul.f32 %v1959, %v1964
    %v1969 = vlaneseq
    %v1970 = vshrl.u32 %v1969, 7
    %v1971 = vsub.s32 0, %v1970
    %v1972 = vrot.slane %v1933, %v1971
    %v1974 = vadd.f32 %v1966, %v1972
    %v1975 = vadd.f32 %v1967, %v1972
    %1976 = vst.msk [vmem:[#allocation8] sm:$0xff] %vm106, %v1974
    %1977 = vst.msk [vmem:[#allocation8 + $0x8] sm:$0xff] %vm106, %v1975
    // Predicated region
    $region74: #{tpu_custom_call.1} parent=1 // pred_check
      _
    $region75: #{tpu_custom_call.1} parent=1 // pred_check_branch
      %1979 = sbr.rel (0) target = $region77
    $region76: #{tpu_custom_call.1} parent=1 // pred_region
      %s1981 = ssub.s32 256, 256
      %1982 = vsyncadd [#allocation4], %s1981
      %s1983 = sshll.u32 [#allocation8], 4
      %s1984 = int_to_ptr.vmem [resolvable:$true] %s1983
      %1989 = dma.vmem_to_hbm [thread:$0]  %s1984, 256, %s15, [#allocation4], 128, 128, 8
    $region77: #{tpu_custom_call.1} parent=1 // pred_fallthru
      _
    // Predicated region
    $region78: #{tpu_custom_call.1} parent=1 // pred_check
      _
    $region79: #{tpu_custom_call.1} parent=1 // pred_check_branch
      %1991 = sbr.rel (0) target = $region81
    $region80: #{tpu_custom_call.1} parent=1 // pred_region
      %1992 = dma.done [#allocation4], 256
    $region81: #{tpu_custom_call.1} parent=1 // pred_fallthru
      _
    %1993 = vsyncpa [#allocation3], 1
    %1994 = vsyncpa [#allocation6], 1
    %1995 = vsyncpa [#allocation4], 1

</llo_original>
